<compile_context>
chip_gen: v6e
topology: v6e:2x2x1
jax: 0.10.0
libtpu: 0.0.40
codegen_flags: <defaults>
</compile_context>

<pallas_src>
import functools

import jax
import jax.numpy as jnp
from jax.experimental import pallas as pl
from jax.experimental.pallas import tpu as pltpu


def _layer_norm(x, gamma, beta, eps=1e-5):
    mean = jnp.mean(x, axis=-1, keepdims=True)
    var = jnp.mean(jnp.square(x - mean), axis=-1, keepdims=True)
    inv = jax.lax.rsqrt(var + eps)
    return (x - mean) * inv * gamma + beta


def encoder_block_kernel(
    x_ref,
    wqkv_ref, bqkv_ref, wo_ref, bo_ref,
    g1_ref, be1_ref,
    w1_ref, b1_ref, w2_ref, b2_ref,
    g2_ref, be2_ref,
    out_ref,
    q_scr, k_scr, v_scr,
    *, num_heads, tq,
):
    qi = pl.program_id(1)
    S = x_ref.shape[1]
    D = x_ref.shape[2]
    hd = D // num_heads

    # ---- fused QKV projection for the whole sequence, once per batch elem ----
    @pl.when(qi == 0)
    def _():
        x_full = x_ref[0].astype(jnp.bfloat16)                        # (S, D)
        qkv = jnp.dot(x_full, wqkv_ref[...],
                      preferred_element_type=jnp.float32) + bqkv_ref[...]  # (S, 3D) f32
        qkv = qkv.astype(jnp.bfloat16)
        # Split once into per-head (H, S, hd) layout so the per-tile loop needs
        # no lane relayouts for K/V.
        q_scr[...] = jnp.stack(
            [qkv[:, h * hd:(h + 1) * hd] for h in range(num_heads)], axis=0)
        k_scr[...] = jnp.stack(
            [qkv[:, D + h * hd:D + (h + 1) * hd] for h in range(num_heads)], axis=0)
        v_scr[...] = jnp.stack(
            [qkv[:, 2 * D + h * hd:2 * D + (h + 1) * hd] for h in range(num_heads)],
            axis=0)

    # ---- attention for this query tile (scale pre-folded into Wq/bq) ----
    row0 = pl.multiple_of(qi * tq, tq)
    qh = q_scr[:, pl.ds(row0, tq), :]                                  # (H, tq, hd) bf16
    kh = k_scr[...]                                                    # (H, S, hd)  bf16
    vh = v_scr[...]                                                    # (H, S, hd)  bf16

    scores = jnp.einsum("hqd,hkd->hqk", qh, kh,
                        preferred_element_type=jnp.float32)            # (H, tq, S) f32
    scores = scores - jnp.max(scores, axis=-1, keepdims=True)
    p = jnp.exp(scores)
    p = p * pl.reciprocal(jnp.sum(p, axis=-1, keepdims=True), approx=True)
    ctx = jnp.einsum("hqk,hkd->hqd", p.astype(jnp.bfloat16), vh,
                     preferred_element_type=jnp.float32)                # (H, tq, hd) f32
    ctx = ctx.astype(jnp.bfloat16)                                      # cast before concat
    attn = jnp.concatenate([ctx[h] for h in range(num_heads)], axis=-1)  # (tq, D) bf16

    attn = jnp.dot(attn, wo_ref[...],
                   preferred_element_type=jnp.float32) + bo_ref[...]

    # ---- Add & Norm 1 (residual tile sliced from the full-seq block) ----
    x_tile = x_ref[0, pl.ds(row0, tq), :]                               # (tq, D) f32
    h1 = _layer_norm(x_tile + attn, g1_ref[...], be1_ref[...])

    # ---- FFN ----
    f = jnp.dot(h1.astype(jnp.bfloat16), w1_ref[...],
                preferred_element_type=jnp.float32) + b1_ref[...]
    f = jax.nn.gelu(f, approximate=True)
    f = jnp.dot(f.astype(jnp.bfloat16), w2_ref[...],
                preferred_element_type=jnp.float32) + b2_ref[...]

    # ---- Add & Norm 2 ----
    out = _layer_norm(h1 + f, g2_ref[...], be2_ref[...])
    out_ref[0] = out.astype(out_ref.dtype)


def pack_params(params, *, num_heads):
    """Fuse Q/K/V weights (scale folded into Q) and cast matmul weights to bf16."""
    D = params["wq"].shape[0]
    hd = D // num_heads
    scale = 1.0 / (hd ** 0.5)
    wqkv = jnp.concatenate(
        [params["wq"] * scale, params["wk"], params["wv"]], axis=1)
    bqkv = jnp.concatenate(
        [params["bq"] * scale, params["bk"], params["bv"]], axis=1)
    return {
        "wqkv": wqkv.astype(jnp.bfloat16),
        "bqkv": bqkv.astype(jnp.float32),
        "wo": params["wo"].astype(jnp.bfloat16),
        "bo": params["bo"].astype(jnp.float32),
        "g1": params["g1"], "be1": params["be1"],
        "w1": params["w1"].astype(jnp.bfloat16),
        "b1": params["b1"].astype(jnp.float32),
        "w2": params["w2"].astype(jnp.bfloat16),
        "b2": params["b2"].astype(jnp.float32),
        "g2": params["g2"], "be2": params["be2"],
    }


def encoder_block(x, packed, *, num_heads, tq=None):
    B, S, D = x.shape
    Hff = packed["w1"].shape[1]
    hd = D // num_heads
    if tq is None:
        tq = S if S <= 128 else 128
    assert S % tq == 0 and (tq % 8 == 0 or tq == S)
    nq = S // tq

    def full_spec(shape):
        # Full-array block, identical for every grid step (grid-invariant:
        # Pallas skips re-DMA when the block index does not change).
        return pl.BlockSpec(shape, lambda b, qi: tuple(0 for _ in shape))

    in_specs = [
        pl.BlockSpec((1, S, D), lambda b, qi: (b, 0, 0)),    # x: full seq
        full_spec((D, 3 * D)), full_spec((1, 3 * D)),        # wqkv, bqkv
        full_spec((D, D)), full_spec((1, D)),                # wo, bo
        full_spec((1, D)), full_spec((1, D)),                # gamma1, beta1
        full_spec((D, Hff)), full_spec((1, Hff)),            # w1, b1
        full_spec((Hff, D)), full_spec((1, D)),              # w2, b2
        full_spec((1, D)), full_spec((1, D)),                # gamma2, beta2
    ]

    flops = int(B * (2 * S * D * 3 * D        # fused QKV projection
                     + 4 * S * S * D          # QK^T + PV
                     + 2 * S * D * D          # output projection
                     + 4 * S * D * Hff))      # FFN
    transcendentals = int(B * S * (num_heads * S + Hff))
    param_bytes = sum(int(v.size) * v.dtype.itemsize for v in packed.values())
    bytes_accessed = int(2 * x.size * x.dtype.itemsize + param_bytes)

    kernel = functools.partial(encoder_block_kernel, num_heads=num_heads, tq=tq)
    return pl.pallas_call(
        kernel,
        out_shape=jax.ShapeDtypeStruct((B, S, D), x.dtype),
        grid=(B, nq),
        in_specs=in_specs,
        out_specs=pl.BlockSpec((1, tq, D), lambda b, qi: (b, qi, 0)),
        scratch_shapes=[
            pltpu.VMEM((num_heads, S, hd), jnp.bfloat16),   # Q (per head, full seq)
            pltpu.VMEM((num_heads, S, hd), jnp.bfloat16),   # K
            pltpu.VMEM((num_heads, S, hd), jnp.bfloat16),   # V
        ],
        compiler_params=pltpu.CompilerParams(
            dimension_semantics=("parallel", "arbitrary"),
            vmem_limit_bytes=64 * 1024 * 1024,
        ),
        cost_estimate=pl.CostEstimate(
            flops=flops,
            transcendentals=transcendentals,
            bytes_accessed=bytes_accessed,
        ),
    )(
        x,
        packed["wqkv"], packed["bqkv"], packed["wo"], packed["bo"],
        packed["g1"], packed["be1"],
        packed["w1"], packed["b1"], packed["w2"], packed["b2"],
        packed["g2"], packed["be2"],
    )


def reference_encoder_block(x, packed, *, num_heads):
    """Plain-JAX fp32 reference (same packed/bf16-quantized weights)."""
    B, S, D = x.shape
    hd = D // num_heads

    wqkv = packed["wqkv"].astype(jnp.float32)
    qkv = x @ wqkv + packed["bqkv"]            # scale already folded into Q cols
    q, k, v = qkv[..., :D], qkv[..., D:2 * D], qkv[..., 2 * D:]

    def split(t):  # (B, S, D) -> (B, H, S, hd)
        return t.reshape(B, S, num_heads, hd).transpose(0, 2, 1, 3)

    qh, kh, vh = split(q), split(k), split(v)
    scores = jnp.einsum("bhqd,bhkd->bhqk", qh, kh)
    p = jax.nn.softmax(scores, axis=-1)
    attn = jnp.einsum("bhqk,bhkd->bhqd", p, vh).transpose(0, 2, 1, 3).reshape(B, S, D)
    attn = attn @ packed["wo"].astype(jnp.float32) + packed["bo"]

    def ln(t, g, b):
        m = jnp.mean(t, axis=-1, keepdims=True)
        va = jnp.mean(jnp.square(t - m), axis=-1, keepdims=True)
        return (t - m) / jnp.sqrt(va + 1e-5) * g + b

    h1 = ln(x + attn, packed["g1"], packed["be1"])
    f = jax.nn.gelu(h1 @ packed["w1"].astype(jnp.float32) + packed["b1"],
                    approximate=True)
    f = f @ packed["w2"].astype(jnp.float32) + packed["b2"]
    return ln(h1 + f, packed["g2"], packed["be2"])


def init_params(key, D, H):
    ks = jax.random.split(key, 8)
    s = 0.02
    return {
        "wq": jax.random.normal(ks[0], (D, D), jnp.float32) * s,
        "wk": jax.random.normal(ks[1], (D, D), jnp.float32) * s,
        "wv": jax.random.normal(ks[2], (D, D), jnp.float32) * s,
        "wo": jax.random.normal(ks[3], (D, D), jnp.float32) * s,
        "bq": jnp.zeros((1, D), jnp.float32),
        "bk": jnp.zeros((1, D), jnp.float32),
        "bv": jnp.zeros((1, D), jnp.float32),
        "bo": jnp.zeros((1, D), jnp.float32),
        "w1": jax.random.normal(ks[4], (D, H), jnp.float32) * s,
        "b1": jax.random.normal(ks[5], (1, H), jnp.float32) * s,
        "w2": jax.random.normal(ks[6], (H, D), jnp.float32) * s,
        "b2": jax.random.normal(ks[7], (1, D), jnp.float32) * s,
        "g1": jnp.ones((1, D), jnp.float32),
        "be1": jnp.zeros((1, D), jnp.float32),
        "g2": jnp.ones((1, D), jnp.float32),
        "be2": jnp.zeros((1, D), jnp.float32),
    }


if __name__ == "__main__":
    # Small but lane-dense demo shapes (D = 128 so outputs are full 128-lane
    # stores); module defaults are embeddings_dims=512, attention_heads=2.
    B, S, D, HEADS = 2, 16, 128, 2
    HIDDEN = 4 * D

    key = jax.random.PRNGKey(0)
    kx, kp = jax.random.split(key)
    x = jax.random.normal(kx, (B, S, D), jnp.float32)
    params = init_params(kp, D, HIDDEN)
    packed = pack_params(params, num_heads=HEADS)

    out = encoder_block(x, packed, num_heads=HEADS, tq=8)   # 2 query tiles per batch
    out = jax.block_until_ready(out)

    ref = reference_encoder_block(x, packed, num_heads=HEADS)
    assert out.shape == (B, S, D)
    max_err = float(jnp.max(jnp.abs(out - ref)))
    assert jnp.allclose(out, ref, atol=3e-2, rtol=3e-2), (
        f"mismatch vs reference (max abs err {max_err})")

    print("KERNEL_OK")
</pallas_src>

<mosaic_0001>
module attributes {stable_mosaic.version = 11 : i64} {
  func.func @encoder_block_kernel(%arg0: i32, %arg1: i32, %arg2: memref<1x16x128xf32, #tpu.memory_space<vmem>>, %arg3: memref<128x384xbf16, #tpu.memory_space<vmem>>, %arg4: memref<1x384xf32, #tpu.memory_space<vmem>>, %arg5: memref<128x128xbf16, #tpu.memory_space<vmem>>, %arg6: memref<1x128xf32, #tpu.memory_space<vmem>>, %arg7: memref<1x128xf32, #tpu.memory_space<vmem>>, %arg8: memref<1x128xf32, #tpu.memory_space<vmem>>, %arg9: memref<128x512xbf16, #tpu.memory_space<vmem>>, %arg10: memref<1x512xf32, #tpu.memory_space<vmem>>, %arg11: memref<512x128xbf16, #tpu.memory_space<vmem>>, %arg12: memref<1x128xf32, #tpu.memory_space<vmem>>, %arg13: memref<1x128xf32, #tpu.memory_space<vmem>>, %arg14: memref<1x128xf32, #tpu.memory_space<vmem>>, %arg15: memref<1x8x128xf32, #tpu.memory_space<vmem>>, %arg16: memref<2x16x64xbf16, #tpu.memory_space<vmem>>, %arg17: memref<2x16x64xbf16, #tpu.memory_space<vmem>>, %arg18: memref<2x16x64xbf16, #tpu.memory_space<vmem>>) attributes {dimension_semantics = [#tpu.dimension_semantics<parallel>, #tpu.dimension_semantics<arbitrary>], iteration_bounds = array<i64: 2, 2>, scalar_prefetch = 0 : i64, scratch_operands = 3 : i64, tpu.core_type = #tpu.core_type<tc>, window_params = [{transform_indices = @transform_0, window_bounds = array<i64: 1, 16, 128>}, {pipeline_mode = #tpu.pipeline_mode<synchronous>, transform_indices = @transform_1, window_bounds = array<i64: 128, 384>}, {pipeline_mode = #tpu.pipeline_mode<synchronous>, transform_indices = @transform_2, window_bounds = array<i64: 1, 384>}, {pipeline_mode = #tpu.pipeline_mode<synchronous>, transform_indices = @transform_3, window_bounds = array<i64: 128, 128>}, {pipeline_mode = #tpu.pipeline_mode<synchronous>, transform_indices = @transform_4, window_bounds = array<i64: 1, 128>}, {pipeline_mode = #tpu.pipeline_mode<synchronous>, transform_indices = @transform_5, window_bounds = array<i64: 1, 128>}, {pipeline_mode = #tpu.pipeline_mode<synchronous>, transform_indices = @transform_6, window_bounds = array<i64: 1, 128>}, {pipeline_mode = #tpu.pipeline_mode<synchronous>, transform_indices = @transform_7, window_bounds = array<i64: 128, 512>}, {pipeline_mode = #tpu.pipeline_mode<synchronous>, transform_indices = @transform_8, window_bounds = array<i64: 1, 512>}, {pipeline_mode = #tpu.pipeline_mode<synchronous>, transform_indices = @transform_9, window_bounds = array<i64: 512, 128>}, {pipeline_mode = #tpu.pipeline_mode<synchronous>, transform_indices = @transform_10, window_bounds = array<i64: 1, 128>}, {pipeline_mode = #tpu.pipeline_mode<synchronous>, transform_indices = @transform_11, window_bounds = array<i64: 1, 128>}, {pipeline_mode = #tpu.pipeline_mode<synchronous>, transform_indices = @transform_12, window_bounds = array<i64: 1, 128>}, {transform_indices = @transform_13, window_bounds = array<i64: 1, 8, 128>}]} {
    %c0_i32 = arith.constant 0 : i32
    %0 = arith.cmpi eq, %arg1, %c0_i32 : i32
    %1 = arith.extui %0 : i1 to i32
    %c0_i32_0 = arith.constant 0 : i32
    %2 = arith.cmpi ne, %1, %c0_i32_0 : i32
    scf.if %2 {
      %c0_53 = arith.constant 0 : index
      %c0_54 = arith.constant 0 : index
      %c0_55 = arith.constant 0 : index
      %114 = vector.load %arg2[%c0_53, %c0_54, %c0_55] : memref<1x16x128xf32, #tpu.memory_space<vmem>>, vector<1x16x128xf32>
      %115 = vector.shape_cast %114 : vector<1x16x128xf32> to vector<16x128xf32>
      %116 = arith.truncf %115 : vector<16x128xf32> to vector<16x128xbf16>
      %c0_56 = arith.constant 0 : index
      %c0_57 = arith.constant 0 : index
      %117 = vector.load %arg3[%c0_56, %c0_57] : memref<128x384xbf16, #tpu.memory_space<vmem>>, vector<128x384xbf16>
      %cst_58 = arith.constant dense<0.000000e+00> : vector<16x384xf32>
      %118 = tpu.matmul %116, %117, %cst_58 {dimension_numbers = #tpu.dot_dimension_numbers<[1], [0], [0], [1], [0, 0, 1, 1], [], []>} : vector<16x128xbf16>, vector<128x384xbf16>, vector<16x384xf32> -> vector<16x384xf32>
      %c0_59 = arith.constant 0 : index
      %c0_60 = arith.constant 0 : index
      %119 = vector.load %arg4[%c0_59, %c0_60] : memref<1x384xf32, #tpu.memory_space<vmem>>, vector<1x384xf32>
      %120 = vector.broadcast %119 : vector<1x384xf32> to vector<16x384xf32>
      %121 = arith.addf %118, %120 : vector<16x384xf32>
      %122 = arith.truncf %121 : vector<16x384xf32> to vector<16x384xbf16>
      %123 = vector.extract_strided_slice %122 {offsets = [0, 0], sizes = [16, 64], strides = [1, 1]} : vector<16x384xbf16> to vector<16x64xbf16>
      %124 = vector.extract_strided_slice %122 {offsets = [0, 64], sizes = [16, 64], strides = [1, 1]} : vector<16x384xbf16> to vector<16x64xbf16>
      %125 = vector.shape_cast %123 : vector<16x64xbf16> to vector<1x16x64xbf16>
      %126 = vector.shape_cast %124 : vector<16x64xbf16> to vector<1x16x64xbf16>
      %127 = tpu.concatenate %125, %126 in 0 : vector<1x16x64xbf16>, vector<1x16x64xbf16> -> vector<2x16x64xbf16>
      %c0_61 = arith.constant 0 : index
      %c0_62 = arith.constant 0 : index
      %c0_63 = arith.constant 0 : index
      %128 = vector.load %arg16[%c0_61, %c0_62, %c0_63] : memref<2x16x64xbf16, #tpu.memory_space<vmem>>, vector<2x16x64xbf16>
      tpu.vector_store %arg16[%c0_61, %c0_62, %c0_63], %127 {strides = array<i32>} : memref<2x16x64xbf16, #tpu.memory_space<vmem>>, vector<2x16x64xbf16>,
      %129 = vector.extract_strided_slice %122 {offsets = [0, 128], sizes = [16, 64], strides = [1, 1]} : vector<16x384xbf16> to vector<16x64xbf16>
      %130 = vector.extract_strided_slice %122 {offsets = [0, 192], sizes = [16, 64], strides = [1, 1]} : vector<16x384xbf16> to vector<16x64xbf16>
      %131 = vector.shape_cast %129 : vector<16x64xbf16> to vector<1x16x64xbf16>
      %132 = vector.shape_cast %130 : vector<16x64xbf16> to vector<1x16x64xbf16>
      %133 = tpu.concatenate %131, %132 in 0 : vector<1x16x64xbf16>, vector<1x16x64xbf16> -> vector<2x16x64xbf16>
      %c0_64 = arith.constant 0 : index
      %c0_65 = arith.constant 0 : index
      %c0_66 = arith.constant 0 : index
      %134 = vector.load %arg17[%c0_64, %c0_65, %c0_66] : memref<2x16x64xbf16, #tpu.memory_space<vmem>>, vector<2x16x64xbf16>
      tpu.vector_store %arg17[%c0_64, %c0_65, %c0_66], %133 {strides = array<i32>} : memref<2x16x64xbf16, #tpu.memory_space<vmem>>, vector<2x16x64xbf16>,
      %135 = vector.extract_strided_slice %122 {offsets = [0, 256], sizes = [16, 64], strides = [1, 1]} : vector<16x384xbf16> to vector<16x64xbf16>
      %136 = vector.extract_strided_slice %122 {offsets = [0, 320], sizes = [16, 64], strides = [1, 1]} : vector<16x384xbf16> to vector<16x64xbf16>
      %137 = vector.shape_cast %135 : vector<16x64xbf16> to vector<1x16x64xbf16>
      %138 = vector.shape_cast %136 : vector<16x64xbf16> to vector<1x16x64xbf16>
      %139 = tpu.concatenate %137, %138 in 0 : vector<1x16x64xbf16>, vector<1x16x64xbf16> -> vector<2x16x64xbf16>
      %c0_67 = arith.constant 0 : index
      %c0_68 = arith.constant 0 : index
      %c0_69 = arith.constant 0 : index
      %140 = vector.load %arg18[%c0_67, %c0_68, %c0_69] : memref<2x16x64xbf16, #tpu.memory_space<vmem>>, vector<2x16x64xbf16>
      tpu.vector_store %arg18[%c0_67, %c0_68, %c0_69], %139 {strides = array<i32>} : memref<2x16x64xbf16, #tpu.memory_space<vmem>>, vector<2x16x64xbf16>,
    } else {
    }
    %c8_i32 = arith.constant 8 : i32
    %3 = arith.muli %arg1, %c8_i32 : i32
    %4 = tpu.assume_multiple %3, 8 : i32
    %c0 = arith.constant 0 : index
    %5 = arith.index_cast %4 : i32 to index
    %c0_1 = arith.constant 0 : index
    %6 = vector.load %arg16[%c0, %5, %c0_1] : memref<2x16x64xbf16, #tpu.memory_space<vmem>>, vector<2x8x64xbf16>
    %c0_2 = arith.constant 0 : index
    %c0_3 = arith.constant 0 : index
    %c0_4 = arith.constant 0 : index
    %7 = vector.load %arg17[%c0_2, %c0_3, %c0_4] : memref<2x16x64xbf16, #tpu.memory_space<vmem>>, vector<2x16x64xbf16>
    %c0_5 = arith.constant 0 : index
    %c0_6 = arith.constant 0 : index
    %c0_7 = arith.constant 0 : index
    %8 = vector.load %arg18[%c0_5, %c0_6, %c0_7] : memref<2x16x64xbf16, #tpu.memory_space<vmem>>, vector<2x16x64xbf16>
    "tpu.trace_start"() <{level = 10 : i32, message = "hqd,hkd->hqk"}> : () -> ()
    %cst = arith.constant dense<0.000000e+00> : vector<2x8x16xf32>
    %9 = tpu.matmul %6, %7, %cst {dimension_numbers = #tpu.dot_dimension_numbers<[2], [2], [1], [1], [0, 0, 0, 1, 1, 1], [0], [0]>} : vector<2x8x64xbf16>, vector<2x16x64xbf16>, vector<2x8x16xf32> -> vector<2x8x16xf32>
    "tpu.trace_stop"() : () -> ()
    %cst_8 = arith.constant dense<0xFF800000> : vector<2x8xf32>
    %10 = vector.multi_reduction <maximumf>, %9, %cst_8 [2] : vector<2x8x16xf32> to vector<2x8xf32>
    %11 = vector.shape_cast %10 : vector<2x8xf32> to vector<2x8x1xf32>
    %12 = vector.broadcast %11 : vector<2x8x1xf32> to vector<2x8x16xf32>
    %13 = arith.subf %9, %12 : vector<2x8x16xf32>
    %14 = math.exp %13 : vector<2x8x16xf32>
    %cst_9 = arith.constant dense<0.000000e+00> : vector<2x8xf32>
    %15 = vector.multi_reduction <add>, %14, %cst_9 [2] : vector<2x8x16xf32> to vector<2x8xf32>
    %16 = vector.shape_cast %15 : vector<2x8xf32> to vector<2x8x1xf32>
    %17 = tpu.reciprocal %16 {approx = true} : vector<2x8x1xf32> -> vector<2x8x1xf32>
    %18 = vector.broadcast %17 : vector<2x8x1xf32> to vector<2x8x16xf32>
    %19 = arith.mulf %14, %18 : vector<2x8x16xf32>
    %20 = arith.truncf %19 : vector<2x8x16xf32> to vector<2x8x16xbf16>
    "tpu.trace_start"() <{level = 10 : i32, message = "hqk,hkd->hqd"}> : () -> ()
    %cst_10 = arith.constant dense<0.000000e+00> : vector<2x8x64xf32>
    %21 = tpu.matmul %20, %8, %cst_10 {dimension_numbers = #tpu.dot_dimension_numbers<[2], [1], [1], [2], [0, 0, 0, 1, 1, 2], [0], [0]>} : vector<2x8x16xbf16>, vector<2x16x64xbf16>, vector<2x8x64xf32> -> vector<2x8x64xf32>
    "tpu.trace_stop"() : () -> ()
    %22 = arith.truncf %21 : vector<2x8x64xf32> to vector<2x8x64xbf16>
    %23 = vector.extract_strided_slice %22 {offsets = [0, 0, 0], sizes = [1, 8, 64], strides = [1, 1, 1]} : vector<2x8x64xbf16> to vector<1x8x64xbf16>
    %24 = vector.shape_cast %23 : vector<1x8x64xbf16> to vector<8x64xbf16>
    %25 = vector.extract_strided_slice %22 {offsets = [1, 0, 0], sizes = [1, 8, 64], strides = [1, 1, 1]} : vector<2x8x64xbf16> to vector<1x8x64xbf16>
    %26 = vector.shape_cast %25 : vector<1x8x64xbf16> to vector<8x64xbf16>
    %27 = tpu.concatenate %24, %26 in 1 : vector<8x64xbf16>, vector<8x64xbf16> -> vector<8x128xbf16>
    %c0_11 = arith.constant 0 : index
    %c0_12 = arith.constant 0 : index
    %28 = vector.load %arg5[%c0_11, %c0_12] : memref<128x128xbf16, #tpu.memory_space<vmem>>, vector<128x128xbf16>
    %cst_13 = arith.constant dense<0.000000e+00> : vector<8x128xf32>
    %29 = tpu.matmul %27, %28, %cst_13 {dimension_numbers = #tpu.dot_dimension_numbers<[1], [0], [0], [1], [0, 0, 1, 1], [], []>} : vector<8x128xbf16>, vector<128x128xbf16>, vector<8x128xf32> -> vector<8x128xf32>
    %c0_14 = arith.constant 0 : index
    %c0_15 = arith.constant 0 : index
    %30 = vector.load %arg6[%c0_14, %c0_15] : memref<1x128xf32, #tpu.memory_space<vmem>>, vector<1x128xf32>
    %31 = vector.broadcast %30 : vector<1x128xf32> to vector<8x128xf32>
    %32 = arith.addf %29, %31 : vector<8x128xf32>
    %c0_16 = arith.constant 0 : index
    %33 = arith.index_cast %4 : i32 to index
    %c0_17 = arith.constant 0 : index
    %34 = vector.load %arg2[%c0_16, %33, %c0_17] : memref<1x16x128xf32, #tpu.memory_space<vmem>>, vector<1x8x128xf32>
    %35 = vector.shape_cast %34 : vector<1x8x128xf32> to vector<8x128xf32>
    %36 = arith.addf %35, %32 : vector<8x128xf32>
    %c0_18 = arith.constant 0 : index
    %c0_19 = arith.constant 0 : index
    %37 = vector.load %arg7[%c0_18, %c0_19] : memref<1x128xf32, #tpu.memory_space<vmem>>, vector<1x128xf32>
    %c0_20 = arith.constant 0 : index
    %c0_21 = arith.constant 0 : index
    %38 = vector.load %arg8[%c0_20, %c0_21] : memref<1x128xf32, #tpu.memory_space<vmem>>, vector<1x128xf32>
    %cst_22 = arith.constant dense<0.000000e+00> : vector<8xf32>
    %39 = vector.multi_reduction <add>, %36, %cst_22 [1] : vector<8x128xf32> to vector<8xf32>
    %40 = vector.shape_cast %39 : vector<8xf32> to vector<8x1xf32>
    %cst_23 = arith.constant 1.280000e+02 : f32
    %41 = vector.broadcast %cst_23 : f32 to vector<8x1xf32>
    %42 = arith.divf %40, %41 : vector<8x1xf32>
    %43 = vector.broadcast %42 : vector<8x1xf32> to vector<8x128xf32>
    %44 = arith.subf %36, %43 : vector<8x128xf32>
    %45 = arith.mulf %44, %44 : vector<8x128xf32>
    %cst_24 = arith.constant dense<0.000000e+00> : vector<8xf32>
    %46 = vector.multi_reduction <add>, %45, %cst_24 [1] : vector<8x128xf32> to vector<8xf32>
    %47 = vector.shape_cast %46 : vector<8xf32> to vector<8x1xf32>
    %cst_25 = arith.constant 1.280000e+02 : f32
    %48 = vector.broadcast %cst_25 : f32 to vector<8x1xf32>
    %49 = arith.divf %47, %48 : vector<8x1xf32>
    %cst_26 = arith.constant 9.99999974E-6 : f32
    %50 = vector.broadcast %cst_26 : f32 to vector<8x1xf32>
    %51 = arith.addf %49, %50 : vector<8x1xf32>
    %52 = math.rsqrt %51 : vector<8x1xf32>
    %53 = vector.broadcast %42 : vector<8x1xf32> to vector<8x128xf32>
    %54 = arith.subf %36, %53 : vector<8x128xf32>
    %55 = vector.broadcast %52 : vector<8x1xf32> to vector<8x128xf32>
    %56 = arith.mulf %54, %55 : vector<8x128xf32>
    %57 = vector.broadcast %37 : vector<1x128xf32> to vector<8x128xf32>
    %58 = arith.mulf %56, %57 : vector<8x128xf32>
    %59 = vector.broadcast %38 : vector<1x128xf32> to vector<8x128xf32>
    %60 = arith.addf %58, %59 : vector<8x128xf32>
    %61 = arith.truncf %60 : vector<8x128xf32> to vector<8x128xbf16>
    %c0_27 = arith.constant 0 : index
    %c0_28 = arith.constant 0 : index
    %62 = vector.load %arg9[%c0_27, %c0_28] : memref<128x512xbf16, #tpu.memory_space<vmem>>, vector<128x512xbf16>
    %cst_29 = arith.constant dense<0.000000e+00> : vector<8x512xf32>
    %63 = tpu.matmul %61, %62, %cst_29 {dimension_numbers = #tpu.dot_dimension_numbers<[1], [0], [0], [1], [0, 0, 1, 1], [], []>} : vector<8x128xbf16>, vector<128x512xbf16>, vector<8x512xf32> -> vector<8x512xf32>
    %c0_30 = arith.constant 0 : index
    %c0_31 = arith.constant 0 : index
    %64 = vector.load %arg10[%c0_30, %c0_31] : memref<1x512xf32, #tpu.memory_space<vmem>>, vector<1x512xf32>
    %65 = vector.broadcast %64 : vector<1x512xf32> to vector<8x512xf32>
    %66 = arith.addf %63, %65 : vector<8x512xf32>
    %67 = arith.mulf %66, %66 : vector<8x512xf32>
    %68 = arith.mulf %66, %67 : vector<8x512xf32>
    %cst_32 = arith.constant 4.471500e-02 : f32
    %69 = vector.broadcast %cst_32 : f32 to vector<8x512xf32>
    %70 = arith.mulf %69, %68 : vector<8x512xf32>
    %71 = arith.addf %66, %70 : vector<8x512xf32>
    %cst_33 = arith.constant 0.797884583 : f32
    %72 = vector.broadcast %cst_33 : f32 to vector<8x512xf32>
    %73 = arith.mulf %72, %71 : vector<8x512xf32>
    %74 = math.tanh %73 : vector<8x512xf32>
    %cst_34 = arith.constant 1.000000e+00 : f32
    %75 = vector.broadcast %cst_34 : f32 to vector<8x512xf32>
    %76 = arith.addf %75, %74 : vector<8x512xf32>
    %cst_35 = arith.constant 5.000000e-01 : f32
    %77 = vector.broadcast %cst_35 : f32 to vector<8x512xf32>
    %78 = arith.mulf %77, %76 : vector<8x512xf32>
    %79 = arith.mulf %66, %78 : vector<8x512xf32>
    %80 = arith.truncf %79 : vector<8x512xf32> to vector<8x512xbf16>
    %c0_36 = arith.constant 0 : index
    %c0_37 = arith.constant 0 : index
    %81 = vector.load %arg11[%c0_36, %c0_37] : memref<512x128xbf16, #tpu.memory_space<vmem>>, vector<512x128xbf16>
    %cst_38 = arith.constant dense<0.000000e+00> : vector<8x128xf32>
    %82 = tpu.matmul %80, %81, %cst_38 {dimension_numbers = #tpu.dot_dimension_numbers<[1], [0], [0], [1], [0, 0, 1, 1], [], []>} : vector<8x512xbf16>, vector<512x128xbf16>, vector<8x128xf32> -> vector<8x128xf32>
    %c0_39 = arith.constant 0 : index
    %c0_40 = arith.constant 0 : index
    %83 = vector.load %arg12[%c0_39, %c0_40] : memref<1x128xf32, #tpu.memory_space<vmem>>, vector<1x128xf32>
    %84 = vector.broadcast %83 : vector<1x128xf32> to vector<8x128xf32>
    %85 = arith.addf %82, %84 : vector<8x128xf32>
    %86 = arith.addf %60, %85 : vector<8x128xf32>
    %c0_41 = arith.constant 0 : index
    %c0_42 = arith.constant 0 : index
    %87 = vector.load %arg13[%c0_41, %c0_42] : memref<1x128xf32, #tpu.memory_space<vmem>>, vector<1x128xf32>
    %c0_43 = arith.constant 0 : index
    %c0_44 = arith.constant 0 : index
    %88 = vector.load %arg14[%c0_43, %c0_44] : memref<1x128xf32, #tpu.memory_space<vmem>>, vector<1x128xf32>
    %cst_45 = arith.constant dense<0.000000e+00> : vector<8xf32>
    %89 = vector.multi_reduction <add>, %86, %cst_45 [1] : vector<8x128xf32> to vector<8xf32>
    %90 = vector.shape_cast %89 : vector<8xf32> to vector<8x1xf32>
    %cst_46 = arith.constant 1.280000e+02 : f32
    %91 = vector.broadcast %cst_46 : f32 to vector<8x1xf32>
    %92 = arith.divf %90, %91 : vector<8x1xf32>
    %93 = vector.broadcast %92 : vector<8x1xf32> to vector<8x128xf32>
    %94 = arith.subf %86, %93 : vector<8x128xf32>
    %95 = arith.mulf %94, %94 : vector<8x128xf32>
    %cst_47 = arith.constant dense<0.000000e+00> : vector<8xf32>
    %96 = vector.multi_reduction <add>, %95, %cst_47 [1] : vector<8x128xf32> to vector<8xf32>
    %97 = vector.shape_cast %96 : vector<8xf32> to vector<8x1xf32>
    %cst_48 = arith.constant 1.280000e+02 : f32
    %98 = vector.broadcast %cst_48 : f32 to vector<8x1xf32>
    %99 = arith.divf %97, %98 : vector<8x1xf32>
    %cst_49 = arith.constant 9.99999974E-6 : f32
    %100 = vector.broadcast %cst_49 : f32 to vector<8x1xf32>
    %101 = arith.addf %99, %100 : vector<8x1xf32>
    %102 = math.rsqrt %101 : vector<8x1xf32>
    %103 = vector.broadcast %92 : vector<8x1xf32> to vector<8x128xf32>
    %104 = arith.subf %86, %103 : vector<8x128xf32>
    %105 = vector.broadcast %102 : vector<8x1xf32> to vector<8x128xf32>
    %106 = arith.mulf %104, %105 : vector<8x128xf32>
    %107 = vector.broadcast %87 : vector<1x128xf32> to vector<8x128xf32>
    %108 = arith.mulf %106, %107 : vector<8x128xf32>
    %109 = vector.broadcast %88 : vector<1x128xf32> to vector<8x128xf32>
    %110 = arith.addf %108, %109 : vector<8x128xf32>
    %c0_50 = arith.constant 0 : index
    %c0_51 = arith.constant 0 : index
    %c0_52 = arith.constant 0 : index
    %111 = vector.load %arg15[%c0_50, %c0_51, %c0_52] : memref<1x8x128xf32, #tpu.memory_space<vmem>>, vector<1x8x128xf32>
    %112 = vector.shape_cast %111 : vector<1x8x128xf32> to vector<8x128xf32>
    %113 = vector.shape_cast %110 : vector<8x128xf32> to vector<1x8x128xf32>
    tpu.vector_store %arg15[%c0_50, %c0_51, %c0_52], %113 {strides = array<i32>} : memref<1x8x128xf32, #tpu.memory_space<vmem>>, vector<1x8x128xf32>,
    return
  }
  func.func @transform_0(%arg0: i32, %arg1: i32) -> (i32, i32, i32) {
    %c0_i32 = arith.constant 0 : i32
    %c0_i32_0 = arith.constant 0 : i32
    %c0_i32_1 = arith.constant 0 : i32
    return %arg0, %c0_i32, %c0_i32_0 : i32, i32, i32
  }
  func.func @transform_1(%arg0: i32, %arg1: i32) -> (i32, i32) {
    %c0_i32 = arith.constant 0 : i32
    %c0_i32_0 = arith.constant 0 : i32
    %c0_i32_1 = arith.constant 0 : i32
    return %c0_i32, %c0_i32_0 : i32, i32
  }
  func.func @transform_2(%arg0: i32, %arg1: i32) -> (i32, i32) {
    %c0_i32 = arith.constant 0 : i32
    %c0_i32_0 = arith.constant 0 : i32
    %c0_i32_1 = arith.constant 0 : i32
    return %c0_i32, %c0_i32_0 : i32, i32
  }
  func.func @transform_3(%arg0: i32, %arg1: i32) -> (i32, i32) {
    %c0_i32 = arith.constant 0 : i32
    %c0_i32_0 = arith.constant 0 : i32
    %c0_i32_1 = arith.constant 0 : i32
    return %c0_i32, %c0_i32_0 : i32, i32
  }
  func.func @transform_4(%arg0: i32, %arg1: i32) -> (i32, i32) {
    %c0_i32 = arith.constant 0 : i32
    %c0_i32_0 = arith.constant 0 : i32
    %c0_i32_1 = arith.constant 0 : i32
    return %c0_i32, %c0_i32_0 : i32, i32
  }
  func.func @transform_5(%arg0: i32, %arg1: i32) -> (i32, i32) {
    %c0_i32 = arith.constant 0 : i32
    %c0_i32_0 = arith.constant 0 : i32
    %c0_i32_1 = arith.constant 0 : i32
    return %c0_i32, %c0_i32_0 : i32, i32
  }
  func.func @transform_6(%arg0: i32, %arg1: i32) -> (i32, i32) {
    %c0_i32 = arith.constant 0 : i32
    %c0_i32_0 = arith.constant 0 : i32
    %c0_i32_1 = arith.constant 0 : i32
    return %c0_i32, %c0_i32_0 : i32, i32
  }
  func.func @transform_7(%arg0: i32, %arg1: i32) -> (i32, i32) {
    %c0_i32 = arith.constant 0 : i32
    %c0_i32_0 = arith.constant 0 : i32
    %c0_i32_1 = arith.constant 0 : i32
    return %c0_i32, %c0_i32_0 : i32, i32
  }
  func.func @transform_8(%arg0: i32, %arg1: i32) -> (i32, i32) {
    %c0_i32 = arith.constant 0 : i32
    %c0_i32_0 = arith.constant 0 : i32
    %c0_i32_1 = arith.constant 0 : i32
    return %c0_i32, %c0_i32_0 : i32, i32
  }
  func.func @transform_9(%arg0: i32, %arg1: i32) -> (i32, i32) {
    %c0_i32 = arith.constant 0 : i32
    %c0_i32_0 = arith.constant 0 : i32
    %c0_i32_1 = arith.constant 0 : i32
    return %c0_i32, %c0_i32_0 : i32, i32
  }
  func.func @transform_10(%arg0: i32, %arg1: i32) -> (i32, i32) {
    %c0_i32 = arith.constant 0 : i32
    %c0_i32_0 = arith.constant 0 : i32
    %c0_i32_1 = arith.constant 0 : i32
    return %c0_i32, %c0_i32_0 : i32, i32
  }
  func.func @transform_11(%arg0: i32, %arg1: i32) -> (i32, i32) {
    %c0_i32 = arith.constant 0 : i32
    %c0_i32_0 = arith.constant 0 : i32
    %c0_i32_1 = arith.constant 0 : i32
    return %c0_i32, %c0_i32_0 : i32, i32
  }
  func.func @transform_12(%arg0: i32, %arg1: i32) -> (i32, i32) {
    %c0_i32 = arith.constant 0 : i32
    %c0_i32_0 = arith.constant 0 : i32
    %c0_i32_1 = arith.constant 0 : i32
    return %c0_i32, %c0_i32_0 : i32, i32
  }
  func.func @transform_13(%arg0: i32, %arg1: i32) -> (i32, i32, i32) {
    %c0_i32 = arith.constant 0 : i32
    %c0_i32_0 = arith.constant 0 : i32
    return %arg0, %arg1, %c0_i32 : i32, i32, i32
  }
}

</mosaic_0001>

<llo_original>
// kernel: tpu_custom_call.1
$region0: #{tpu_custom_call.1}
  #allocation0 [shape = 'u32[]', space=smem, size = 0x4, offset = 0x4, fixed_abs, tag = 'smem constant byte address 0x4 - core index']
  #allocation1 [shape = 'u32[144,128]{1,0:T(1,128)}', space=vmem, size = 0x12000, scoped, tag = 'internal scratch']
  #allocation2 [shape = 'bf16[2,16,64]{2,1,0:T(8,128)(2,1)}', space=vmem, size = 0x2000, scoped, tag = 'scratch operand']
  #allocation3 [shape = 'bf16[2,16,64]{2,1,0:T(8,128)(2,1)}', space=vmem, size = 0x2000, scoped, tag = 'scratch operand']
  #allocation4 [shape = 'bf16[2,16,64]{2,1,0:T(8,128)(2,1)}', space=vmem, size = 0x2000, scoped, tag = 'scratch operand']
  %s0 = inlined_call_operand.hbm [shape: f32[2,16,128], index: 0, kind: input, shape index: {}]
  %s1 = inlined_call_operand.hbm [shape: bf16[128,384], index: 1, kind: input, shape index: {}]
  %s2 = inlined_call_operand.vmem [shape: f32[1,384], index: 2, kind: input, shape index: {}]
  %s3 = inlined_call_operand.hbm [shape: bf16[128,128], index: 3, kind: input, shape index: {}]
  %s4 = inlined_call_operand.hbm [shape: f32[1,128], index: 4, kind: input, shape index: {}]
  %s5 = inlined_call_operand.vmem [shape: f32[1,128], index: 5, kind: input, shape index: {}]
  %s6 = inlined_call_operand.vmem [shape: f32[1,128], index: 6, kind: input, shape index: {}]
  %s7 = inlined_call_operand.hbm [shape: bf16[128,512], index: 7, kind: input, shape index: {}]
  %s8 = inlined_call_operand.vmem [shape: f32[1,512], index: 8, kind: input, shape index: {}]
  %s9 = inlined_call_operand.hbm [shape: bf16[512,128], index: 9, kind: input, shape index: {}]
  %s10 = inlined_call_operand.vmem [shape: f32[1,128], index: 10, kind: input, shape index: {}]
  %s11 = inlined_call_operand.vmem [shape: f32[1,128], index: 11, kind: input, shape index: {}]
  %s12 = inlined_call_operand.vmem [shape: f32[1,128], index: 12, kind: input, shape index: {}]
  %s13 = inlined_call_operand.hbm [shape: f32[2,16,128], index: 13, kind: output, shape index: {}]
  %s14 = sld [smem:[#allocation0]]
  $region113: #{tpu_custom_call.1} parent=0
    _
  %s16 = ssub.s32 1, %s14
  %s17 = scalar_select 0, %s16, %s14
  $region1: #{tpu_custom_call.1} parent=0
    #allocation5 [shape = 'u8[16384]{0}', space=vmem, size = 0x4000, scoped, tag = 'input window, operand 0']
    #allocation6 [shape = 's32[2]{0}', space=sflag, size = 0x8, scoped, tag = 'scoped memory for tpu_custom_call.1']
    #allocation7 [shape = 's32[2]{0}', space=sflag, size = 0x8, scoped, tag = 'scoped memory for tpu_custom_call.1']
    #allocation8 [shape = 'u8[98304]{0}', space=vmem, size = 0x18000, scoped, tag = 'input window, operand 1, single buffered']
    #allocation9 [shape = 's32[1]{0}', space=sflag, size = 0x4, scoped, tag = 'scoped memory for tpu_custom_call.1']
    #allocation10 [shape = 'u8[32768]{0}', space=vmem, size = 0x8000, scoped, tag = 'input window, operand 3, single buffered']
    #allocation11 [shape = 'u8[512]{0}', space=vmem, size = 0x400, scoped, tag = 'input window, operand 4, single buffered']
    #allocation12 [shape = 's32[1]{0}', space=sflag, size = 0x4, scoped, tag = 'scoped memory for tpu_custom_call.1']
    #allocation13 [shape = 'u8[131072]{0}', space=vmem, size = 0x20000, scoped, tag = 'input window, operand 7, single buffered']
    #allocation14 [shape = 'u8[131072]{0}', space=vmem, size = 0x20000, scoped, tag = 'input window, operand 9, single buffered']
    #allocation15 [shape = 's32[1]{0}', space=sflag, size = 0x4, scoped, tag = 'scoped memory for tpu_custom_call.1']
    #allocation16 [shape = 'u8[8192]{0}', space=vmem, size = 0x2000, scoped, tag = 'output window, operand 0']
    %18 = vsyncpa [#allocation6], 0
    %s19 = scalar_lea.sflag [#allocation6], 1
    %20 = vsyncpa %s19, 0
    %21 = vsyncpa [#allocation9], 0
    %22 = vsyncpa [#allocation12], 0
    %23 = vsyncpa [#allocation15], 0
    %24 = vsyncpa [#allocation7], 0
    %s25 = scalar_lea.sflag [#allocation7], 1
    %26 = vsyncpa %s25, 0
    loop: start=0, step=1, limit=6
    $region2: #{tpu_custom_call.1} parent=1 // loop_pre_header
      _
    $region3: #{tpu_custom_call.1} parent=1 // loop_header
      %s28 = sphi 0, %s32
      %p29 = scmp.ge.s32.totalorder %s28, 6
      %s35 = sphi 0, %s47
      %s36 = sphi 0, %s43
      %s37 = sphi 0, %s35
      %s38 = sphi 0, %s36
      %s39 = sphi 0, %s37
      %s40 = sphi 0, %s38
      %s50 = sphi 0, %s52
      %s53 = sphi 0, %s50
      %s54 = sphi 0, %s53
      %s70 = sphi 0, %s54
      %s74 = sphi 0, %s74
      %s76 = sphi 0, %s74
      %s77 = sphi 0, %s76
      %s91 = sphi 0, %s77
      %s95 = sphi 0, %s95
      %s97 = sphi 0, %s95
      %s98 = sphi 0, %s97
      %s112 = sphi 0, %s98
      %s116 = sphi 0, %s116
      %s118 = sphi 0, %s116
      %s119 = sphi 0, %s118
      %s133 = sphi 0, %s119
      %s137 = sphi 0, %s137
      %s139 = sphi 0, %s137
      %s140 = sphi 0, %s139
      %s154 = sphi 0, %s140
      %s158 = sphi 0, %s158
      %s160 = sphi 0, %s158
      %s161 = sphi 0, %s160
      %s175 = sphi 0, %s161
      %s179 = sphi 0, %s179
      %s181 = sphi 0, %s179
      %s182 = sphi 0, %s181
      %s196 = sphi 0, %s182
      %s200 = sphi 0, %s200
      %s202 = sphi 0, %s200
      %s203 = sphi 0, %s202
      %s217 = sphi 0, %s203
      %s221 = sphi 0, %s221
      %s223 = sphi 0, %s221
      %s224 = sphi 0, %s223
      %s238 = sphi 0, %s224
      %s242 = sphi 0, %s242
      %s244 = sphi 0, %s242
      %s245 = sphi 0, %s244
      %s259 = sphi 0, %s245
      %s263 = sphi 0, %s263
      %s265 = sphi 0, %s263
      %s266 = sphi 0, %s265
      %s280 = sphi 0, %s266
      %s284 = sphi 0, %s284
      %s286 = sphi 0, %s284
      %s287 = sphi 0, %s286
      %s301 = sphi 0, %s287
      %s305 = sphi 0, %s305
      %s307 = sphi 0, %s305
      %s308 = sphi 0, %s307
      %s322 = sphi 0, %s308
      %s330 = sphi 0, %s332
      %s333 = sphi 0, %s330
      %s334 = sphi 0, %s333
      %s350 = sphi 0, %s334
    $region4: #{tpu_custom_call.1} parent=1 // loop_header_branch
      %31 = sbr.rel (%p29) target = $region8
    $region5: #{tpu_custom_call.1} parent=1 // loop_body
      %s33 = ssub.s32 %s28, 1
      %s34 = ssub.s32 %s28, 2
      %s41 = sadd.s32 1, %s36
      %p42 = scmp.ge.s32.totalorder %s41, 2
      %s43 = scalar_select %p42, 0, %s41
      %s44 = sadd.s32 1, %s35
      %s45 = scalar_select %p42, %s44, %s35
      %p46 = scmp.ge.s32.totalorder %s45, 2
      %s47 = scalar_select %p46, 0, %s45
      %s48 = ssub.s32 %s35, %s47
      %p49 = scmp.eq.s32.totalorder %s48, 0
      %s51 = sadd.s32 %s50, 1
      %s52 = scalar_select %p49, %s50, %s51
      %p55 = pneg %p49
      %p56 = scmp.eq.s32.totalorder %s28, 3
      %p57 = por %p55, %p56
      %p58 = scmp.ne.s32.totalorder %s50, %s53
      %p59 = scmp.eq.s32.totalorder %s28, 0
      %p60 = por %p58, %p59
      %p61 = scmp.ne.s32.totalorder %s50, %s53
      %p62 = scmp.eq.s32.totalorder %s33, 3
      %p63 = por %p61, %p62
      %p64 = scmp.ne.s32.totalorder %s53, %s54
      %p65 = scmp.eq.s32.totalorder %s33, 0
      %p66 = por %p64, %p65
      %p67 = scmp.ne.s32.totalorder %s53, %s54
      %p68 = scmp.eq.s32.totalorder %s34, 3
      %p69 = por %p67, %p68
      %p71 = scmp.ne.s32.totalorder %s54, %s70
      %p72 = scmp.eq.s32.totalorder %s34, 0
      %p73 = por %p71, %p72
      %s75 = sadd.s32 %s74, 1
      %p78 = scmp.eq.s32.totalorder %s28, 3
      %p79 = scmp.ne.s32.totalorder %s74, %s76
      %p80 = scmp.eq.s32.totalorder %s28, 0
      %p81 = por %p79, %p80
      %p82 = scmp.ne.s32.totalorder %s74, %s76
      %p83 = scmp.eq.s32.totalorder %s33, 3
      %p84 = por %p82, %p83
      %p85 = scmp.ne.s32.totalorder %s76, %s77
      %p86 = scmp.eq.s32.totalorder %s33, 0
      %p87 = por %p85, %p86
      %p88 = scmp.ne.s32.totalorder %s76, %s77
      %p89 = scmp.eq.s32.totalorder %s34, 3
      %p90 = por %p88, %p89
      %p92 = scmp.ne.s32.totalorder %s77, %s91
      %p93 = scmp.eq.s32.totalorder %s34, 0
      %p94 = por %p92, %p93
      %s96 = sadd.s32 %s95, 1
      %p99 = scmp.eq.s32.totalorder %s28, 3
      %p100 = scmp.ne.s32.totalorder %s95, %s97
      %p101 = scmp.eq.s32.totalorder %s28, 0
      %p102 = por %p100, %p101
      %p103 = scmp.ne.s32.totalorder %s95, %s97
      %p104 = scmp.eq.s32.totalorder %s33, 3
      %p105 = por %p103, %p104
      %p106 = scmp.ne.s32.totalorder %s97, %s98
      %p107 = scmp.eq.s32.totalorder %s33, 0
      %p108 = por %p106, %p107
      %p109 = scmp.ne.s32.totalorder %s97, %s98
      %p110 = scmp.eq.s32.totalorder %s34, 3
      %p111 = por %p109, %p110
      %p113 = scmp.ne.s32.totalorder %s98, %s112
      %p114 = scmp.eq.s32.totalorder %s34, 0
      %p115 = por %p113, %p114
      %s117 = sadd.s32 %s116, 1
      %p120 = scmp.eq.s32.totalorder %s28, 3
      %p121 = scmp.ne.s32.totalorder %s116, %s118
      %p122 = scmp.eq.s32.totalorder %s28, 0
      %p123 = por %p121, %p122
      %p124 = scmp.ne.s32.totalorder %s116, %s118
      %p125 = scmp.eq.s32.totalorder %s33, 3
      %p126 = por %p124, %p125
      %p127 = scmp.ne.s32.totalorder %s118, %s119
      %p128 = scmp.eq.s32.totalorder %s33, 0
      %p129 = por %p127, %p128
      %p130 = scmp.ne.s32.totalorder %s118, %s119
      %p131 = scmp.eq.s32.totalorder %s34, 3
      %p132 = por %p130, %p131
      %p134 = scmp.ne.s32.totalorder %s119, %s133
      %p135 = scmp.eq.s32.totalorder %s34, 0
      %p136 = por %p134, %p135
      %s138 = sadd.s32 %s137, 1
      %p141 = scmp.eq.s32.totalorder %s28, 3
      %p142 = scmp.ne.s32.totalorder %s137, %s139
      %p143 = scmp.eq.s32.totalorder %s28, 0
      %p144 = por %p142, %p143
      %p145 = scmp.ne.s32.totalorder %s137, %s139
      %p146 = scmp.eq.s32.totalorder %s33, 3
      %p147 = por %p145, %p146
      %p148 = scmp.ne.s32.totalorder %s139, %s140
      %p149 = scmp.eq.s32.totalorder %s33, 0
      %p150 = por %p148, %p149
      %p151 = scmp.ne.s32.totalorder %s139, %s140
      %p152 = scmp.eq.s32.totalorder %s34, 3
      %p153 = por %p151, %p152
      %p155 = scmp.ne.s32.totalorder %s140, %s154
      %p156 = scmp.eq.s32.totalorder %s34, 0
      %p157 = por %p155, %p156
      %s159 = sadd.s32 %s158, 1
      %p162 = scmp.eq.s32.totalorder %s28, 3
      %p163 = scmp.ne.s32.totalorder %s158, %s160
      %p164 = scmp.eq.s32.totalorder %s28, 0
      %p165 = por %p163, %p164
      %p166 = scmp.ne.s32.totalorder %s158, %s160
      %p167 = scmp.eq.s32.totalorder %s33, 3
      %p168 = por %p166, %p167
      %p169 = scmp.ne.s32.totalorder %s160, %s161
      %p170 = scmp.eq.s32.totalorder %s33, 0
      %p171 = por %p169, %p170
      %p172 = scmp.ne.s32.totalorder %s160, %s161
      %p173 = scmp.eq.s32.totalorder %s34, 3
      %p174 = por %p172, %p173
      %p176 = scmp.ne.s32.totalorder %s161, %s175
      %p177 = scmp.eq.s32.totalorder %s34, 0
      %p178 = por %p176, %p177
      %s180 = sadd.s32 %s179, 1
      %p183 = scmp.eq.s32.totalorder %s28, 3
      %p184 = scmp.ne.s32.totalorder %s179, %s181
      %p185 = scmp.eq.s32.totalorder %s28, 0
      %p186 = por %p184, %p185
      %p187 = scmp.ne.s32.totalorder %s179, %s181
      %p188 = scmp.eq.s32.totalorder %s33, 3
      %p189 = por %p187, %p188
      %p190 = scmp.ne.s32.totalorder %s181, %s182
      %p191 = scmp.eq.s32.totalorder %s33, 0
      %p192 = por %p190, %p191
      %p193 = scmp.ne.s32.totalorder %s181, %s182
      %p194 = scmp.eq.s32.totalorder %s34, 3
      %p195 = por %p193, %p194
      %p197 = scmp.ne.s32.totalorder %s182, %s196
      %p198 = scmp.eq.s32.totalorder %s34, 0
      %p199 = por %p197, %p198
      %s201 = sadd.s32 %s200, 1
      %p204 = scmp.eq.s32.totalorder %s28, 3
      %p205 = scmp.ne.s32.totalorder %s200, %s202
      %p206 = scmp.eq.s32.totalorder %s28, 0
      %p207 = por %p205, %p206
      %p208 = scmp.ne.s32.totalorder %s200, %s202
      %p209 = scmp.eq.s32.totalorder %s33, 3
      %p210 = por %p208, %p209
      %p211 = scmp.ne.s32.totalorder %s202, %s203
      %p212 = scmp.eq.s32.totalorder %s33, 0
      %p213 = por %p211, %p212
      %p214 = scmp.ne.s32.totalorder %s202, %s203
      %p215 = scmp.eq.s32.totalorder %s34, 3
      %p216 = por %p214, %p215
      %p218 = scmp.ne.s32.totalorder %s203, %s217
      %p219 = scmp.eq.s32.totalorder %s34, 0
      %p220 = por %p218, %p219
      %s222 = sadd.s32 %s221, 1
      %p225 = scmp.eq.s32.totalorder %s28, 3
      %p226 = scmp.ne.s32.totalorder %s221, %s223
      %p227 = scmp.eq.s32.totalorder %s28, 0
      %p228 = por %p226, %p227
      %p229 = scmp.ne.s32.totalorder %s221, %s223
      %p230 = scmp.eq.s32.totalorder %s33, 3
      %p231 = por %p229, %p230
      %p232 = scmp.ne.s32.totalorder %s223, %s224
      %p233 = scmp.eq.s32.totalorder %s33, 0
      %p234 = por %p232, %p233
      %p235 = scmp.ne.s32.totalorder %s223, %s224
      %p236 = scmp.eq.s32.totalorder %s34, 3
      %p237 = por %p235, %p236
      %p239 = scmp.ne.s32.totalorder %s224, %s238
      %p240 = scmp.eq.s32.totalorder %s34, 0
      %p241 = por %p239, %p240
      %s243 = sadd.s32 %s242, 1
      %p246 = scmp.eq.s32.totalorder %s28, 3
      %p247 = scmp.ne.s32.totalorder %s242, %s244
      %p248 = scmp.eq.s32.totalorder %s28, 0
      %p249 = por %p247, %p248
      %p250 = scmp.ne.s32.totalorder %s242, %s244
      %p251 = scmp.eq.s32.totalorder %s33, 3
      %p252 = por %p250, %p251
      %p253 = scmp.ne.s32.totalorder %s244, %s245
      %p254 = scmp.eq.s32.totalorder %s33, 0
      %p255 = por %p253, %p254
      %p256 = scmp.ne.s32.totalorder %s244, %s245
      %p257 = scmp.eq.s32.totalorder %s34, 3
      %p258 = por %p256, %p257
      %p260 = scmp.ne.s32.totalorder %s245, %s259
      %p261 = scmp.eq.s32.totalorder %s34, 0
      %p262 = por %p260, %p261
      %s264 = sadd.s32 %s263, 1
      %p267 = scmp.eq.s32.totalorder %s28, 3
      %p268 = scmp.ne.s32.totalorder %s263, %s265
      %p269 = scmp.eq.s32.totalorder %s28, 0
      %p270 = por %p268, %p269
      %p271 = scmp.ne.s32.totalorder %s263, %s265
      %p272 = scmp.eq.s32.totalorder %s33, 3
      %p273 = por %p271, %p272
      %p274 = scmp.ne.s32.totalorder %s265, %s266
      %p275 = scmp.eq.s32.totalorder %s33, 0
      %p276 = por %p274, %p275
      %p277 = scmp.ne.s32.totalorder %s265, %s266
      %p278 = scmp.eq.s32.totalorder %s34, 3
      %p279 = por %p277, %p278
      %p281 = scmp.ne.s32.totalorder %s266, %s280
      %p282 = scmp.eq.s32.totalorder %s34, 0
      %p283 = por %p281, %p282
      %s285 = sadd.s32 %s284, 1
      %p288 = scmp.eq.s32.totalorder %s28, 3
      %p289 = scmp.ne.s32.totalorder %s284, %s286
      %p290 = scmp.eq.s32.totalorder %s28, 0
      %p291 = por %p289, %p290
      %p292 = scmp.ne.s32.totalorder %s284, %s286
      %p293 = scmp.eq.s32.totalorder %s33, 3
      %p294 = por %p292, %p293
      %p295 = scmp.ne.s32.totalorder %s286, %s287
      %p296 = scmp.eq.s32.totalorder %s33, 0
      %p297 = por %p295, %p296
      %p298 = scmp.ne.s32.totalorder %s286, %s287
      %p299 = scmp.eq.s32.totalorder %s34, 3
      %p300 = por %p298, %p299
      %p302 = scmp.ne.s32.totalorder %s287, %s301
      %p303 = scmp.eq.s32.totalorder %s34, 0
      %p304 = por %p302, %p303
      %s306 = sadd.s32 %s305, 1
      %p309 = scmp.eq.s32.totalorder %s28, 3
      %p310 = scmp.ne.s32.totalorder %s305, %s307
      %p311 = scmp.eq.s32.totalorder %s28, 0
      %p312 = por %p310, %p311
      %p313 = scmp.ne.s32.totalorder %s305, %s307
      %p314 = scmp.eq.s32.totalorder %s33, 3
      %p315 = por %p313, %p314
      %p316 = scmp.ne.s32.totalorder %s307, %s308
      %p317 = scmp.eq.s32.totalorder %s33, 0
      %p318 = por %p316, %p317
      %p319 = scmp.ne.s32.totalorder %s307, %s308
      %p320 = scmp.eq.s32.totalorder %s34, 3
      %p321 = por %p319, %p320
      %p323 = scmp.ne.s32.totalorder %s308, %s322
      %p324 = scmp.eq.s32.totalorder %s34, 0
      %p325 = por %p323, %p324
      %s326 = ssub.s32 %s35, %s47
      %s327 = ssub.s32 %s36, %s43
      %s328 = sor.u32 %s326, %s327
      %p329 = scmp.eq.s32.totalorder %s328, 0
      %s331 = sadd.s32 %s330, 1
      %s332 = scalar_select %p329, %s330, %s331
      %p335 = pneg %p329
      %p336 = scmp.eq.s32.totalorder %s28, 3
      %p337 = por %p335, %p336
      %p338 = scmp.ne.s32.totalorder %s330, %s333
      %p339 = scmp.eq.s32.totalorder %s28, 0
      %p340 = por %p338, %p339
      %p341 = scmp.ne.s32.totalorder %s330, %s333
      %p342 = scmp.eq.s32.totalorder %s33, 3
      %p343 = por %p341, %p342
      %p344 = scmp.ne.s32.totalorder %s333, %s334
      %p345 = scmp.eq.s32.totalorder %s33, 0
      %p346 = por %p344, %p345
      %p347 = scmp.ne.s32.totalorder %s333, %s334
      %p348 = scmp.eq.s32.totalorder %s34, 3
      %p349 = por %p347, %p348
      %p351 = scmp.ne.s32.totalorder %s334, %s350
      %p352 = scmp.eq.s32.totalorder %s34, 0
      %p353 = por %p351, %p352
      %p354 = scmp.le.s32.totalorder 1, %s28
      %p355 = scmp.lt.s32.totalorder %s28, 5
      %p356 = pnand %p354, %p355
      %p357 = pneg %p356
      // Predicated region
      $region9: #{tpu_custom_call.1} parent=5 // pred_check
        _
      $region10: #{tpu_custom_call.1} parent=5 // pred_check_branch
        %359 = sbr.rel (%p356) target = $region12
      $region11: #{tpu_custom_call.1} parent=5 // pred_region
        %s360 = ssub.s32 %s28, 1
        // Predicated region
        $region13: #{tpu_custom_call.1} parent=11 // pred_check
          %p361 = pneg %p87
        $region14: #{tpu_custom_call.1} parent=11 // pred_check_branch
          %363 = sbr.rel (%p361) target = $region16
        $region15: #{tpu_custom_call.1} parent=11 // pred_region
          %s365 = ssub.s32 3072, 3072
          %366 = vsyncadd [#allocation9], %s365
          %s367 = sshll.u32 [#allocation8], 4
          %s368 = int_to_ptr.vmem [resolvable:$true] %s367
          %373 = dma.hbm_to_vmem [thread:$0]  %s1, 3072, %s368, [#allocation9], 192, 192, 12
        $region16: #{tpu_custom_call.1} parent=11 // pred_fallthru
          _
        // Predicated region
        $region17: #{tpu_custom_call.1} parent=11 // pred_check
          %p374 = pneg %p108
        $region18: #{tpu_custom_call.1} parent=11 // pred_check_branch
          %376 = sbr.rel (%p374) target = $region20
        $region19: #{tpu_custom_call.1} parent=11 // pred_region
          _
        $region20: #{tpu_custom_call.1} parent=11 // pred_fallthru
          _
        // Predicated region
        $region21: #{tpu_custom_call.1} parent=11 // pred_check
          %p377 = pneg %p129
        $region22: #{tpu_custom_call.1} parent=11 // pred_check_branch
          %379 = sbr.rel (%p377) target = $region24
        $region23: #{tpu_custom_call.1} parent=11 // pred_region
          %s381 = ssub.s32 1024, 1024
          %382 = vsyncadd [#allocation9], %s381
          %s383 = sshll.u32 [#allocation10], 4
          %s384 = int_to_ptr.vmem [resolvable:$true] %s383
          %389 = dma.hbm_to_vmem [thread:$0]  %s3, 1024, %s384, [#allocation9], 64, 64, 4
        $region24: #{tpu_custom_call.1} parent=11 // pred_fallthru
          _
        // Predicated region
        $region25: #{tpu_custom_call.1} parent=11 // pred_check
          %p390 = pneg %p150
        $region26: #{tpu_custom_call.1} parent=11 // pred_check_branch
          %392 = sbr.rel (%p390) target = $region28
        $region27: #{tpu_custom_call.1} parent=11 // pred_region
          %s394 = ssub.s32 16, 16
          %395 = vsyncadd [#allocation12], %s394
          %s397 = sshll.u32 [#allocation11], 4
          %s398 = int_to_ptr.vmem [resolvable:$true] %s397
          %400 = dma.hbm_to_vmem [thread:$0]  %s4, 16, %s398, [#allocation12]
        $region28: #{tpu_custom_call.1} parent=11 // pred_fallthru
          _
        // Predicated region
        $region29: #{tpu_custom_call.1} parent=11 // pred_check
          %p401 = pneg %p171
        $region30: #{tpu_custom_call.1} parent=11 // pred_check_branch
          %403 = sbr.rel (%p401) target = $region32
        $region31: #{tpu_custom_call.1} parent=11 // pred_region
          _
        $region32: #{tpu_custom_call.1} parent=11 // pred_fallthru
          _
        // Predicated region
        $region33: #{tpu_custom_call.1} parent=11 // pred_check
          %p404 = pneg %p192
        $region34: #{tpu_custom_call.1} parent=11 // pred_check_branch
          %406 = sbr.rel (%p404) target = $region36
        $region35: #{tpu_custom_call.1} parent=11 // pred_region
          _
        $region36: #{tpu_custom_call.1} parent=11 // pred_fallthru
          _
        // Predicated region
        $region37: #{tpu_custom_call.1} parent=11 // pred_check
          %p407 = pneg %p213
        $region38: #{tpu_custom_call.1} parent=11 // pred_check_branch
          %409 = sbr.rel (%p407) target = $region40
        $region39: #{tpu_custom_call.1} parent=11 // pred_region
          %s411 = ssub.s32 4096, 4096
          %412 = vsyncadd [#allocation12], %s411
          %s413 = sshll.u32 [#allocation13], 4
          %s414 = int_to_ptr.vmem [resolvable:$true] %s413
          %419 = dma.hbm_to_vmem [thread:$0]  %s7, 4096, %s414, [#allocation12], 256, 256, 16
        $region40: #{tpu_custom_call.1} parent=11 // pred_fallthru
          _
        // Predicated region
        $region41: #{tpu_custom_call.1} parent=11 // pred_check
          %p420 = pneg %p234
        $region42: #{tpu_custom_call.1} parent=11 // pred_check_branch
          %422 = sbr.rel (%p420) target = $region44
        $region43: #{tpu_custom_call.1} parent=11 // pred_region
          _
        $region44: #{tpu_custom_call.1} parent=11 // pred_fallthru
          _
        // Predicated region
        $region45: #{tpu_custom_call.1} parent=11 // pred_check
          %p423 = pneg %p255
        $region46: #{tpu_custom_call.1} parent=11 // pred_check_branch
          %425 = sbr.rel (%p423) target = $region48
        $region47: #{tpu_custom_call.1} parent=11 // pred_region
          %s427 = ssub.s32 4096, 4096
          %428 = vsyncadd [#allocation15], %s427
          %s429 = sshll.u32 [#allocation14], 4
          %s430 = int_to_ptr.vmem [resolvable:$true] %s429
          %435 = dma.hbm_to_vmem [thread:$0]  %s9, 4096, %s430, [#allocation15], 64, 64, 4
        $region48: #{tpu_custom_call.1} parent=11 // pred_fallthru
          _
        // Predicated region
        $region49: #{tpu_custom_call.1} parent=11 // pred_check
          %p436 = pneg %p276
        $region50: #{tpu_custom_call.1} parent=11 // pred_check_branch
          %438 = sbr.rel (%p436) target = $region52
        $region51: #{tpu_custom_call.1} parent=11 // pred_region
          _
        $region52: #{tpu_custom_call.1} parent=11 // pred_fallthru
          _
        // Predicated region
        $region53: #{tpu_custom_call.1} parent=11 // pred_check
          %p439 = pneg %p297
        $region54: #{tpu_custom_call.1} parent=11 // pred_check_branch
          %441 = sbr.rel (%p439) target = $region56
        $region55: #{tpu_custom_call.1} parent=11 // pred_region
          _
        $region56: #{tpu_custom_call.1} parent=11 // pred_fallthru
          _
        // Predicated region
        $region57: #{tpu_custom_call.1} parent=11 // pred_check
          %p442 = pneg %p318
        $region58: #{tpu_custom_call.1} parent=11 // pred_check_branch
          %444 = sbr.rel (%p442) target = $region60
        $region59: #{tpu_custom_call.1} parent=11 // pred_region
          _
        $region60: #{tpu_custom_call.1} parent=11 // pred_fallthru
          _
      $region12: #{tpu_custom_call.1} parent=5 // pred_fallthru
        _
      %p445 = scmp.lt.s32.totalorder %s28, 4
      // Predicated region
      $region61: #{tpu_custom_call.1} parent=5 // pred_check
        %p446 = pneg %p445
      $region62: #{tpu_custom_call.1} parent=5 // pred_check_branch
        %448 = sbr.rel (%p446) target = $region64
      $region63: #{tpu_custom_call.1} parent=5 // pred_region
        // Predicated region
        $region65: #{tpu_custom_call.1} parent=63 // pred_check
          %p449 = pneg %p60
        $region66: #{tpu_custom_call.1} parent=63 // pred_check_branch
          %451 = sbr.rel (%p449) target = $region68
        $region67: #{tpu_custom_call.1} parent=63 // pred_region
          %s452 = sand.u32 %s50, 1
          %s453 = scalar_lea.sflag [#allocation6], %s452
          %s454 = sand.u32 %s50, 1
          %s455 = smul.addr %s454, 16
          %s456 = scalar_lea.vmem [#allocation5], %s455
          %s458 = ssub.s32 256, 256
          %459 = vsyncadd %s453, %s458
          %s460 = smul.addr %s35, 2
          %s461 = smul.addr %s460, 128
          %s462 = scalar_lea.hbm %s0, %s461
          %s463 = sshll.u32 %s456, 4
          %s464 = int_to_ptr.vmem [resolvable:$true] %s463
          %469 = dma.hbm_to_vmem [thread:$0]  %s462, 256, %s464, %s453, 128, 128, 8
        $region68: #{tpu_custom_call.1} parent=63 // pred_fallthru
          _
      $region64: #{tpu_custom_call.1} parent=5 // pred_fallthru
        _
      %p470 = scmp.le.s32.totalorder 1, %s28
      %p471 = scmp.lt.s32.totalorder %s28, 5
      %p472 = pnand %p470, %p471
      %p473 = pneg %p472
      // Predicated region
      $region69: #{tpu_custom_call.1} parent=5 // pred_check
        _
      $region70: #{tpu_custom_call.1} parent=5 // pred_check_branch
        %475 = sbr.rel (%p472) target = $region72
      $region71: #{tpu_custom_call.1} parent=5 // pred_region
        %s476 = ssub.s32 %s28, 1
        %s477 = sand.u32 %s53, 1
        %s478 = scalar_lea.sflag [#allocation6], %s477
        %s479 = sand.u32 %s53, 1
        %s480 = smul.addr %s479, 16
        %s481 = scalar_lea.vmem [#allocation5], %s480
        // Predicated region
        $region73: #{tpu_custom_call.1} parent=71 // pred_check
          %p482 = pneg %p66
        $region74: #{tpu_custom_call.1} parent=71 // pred_check_branch
          %484 = sbr.rel (%p482) target = $region76
        $region75: #{tpu_custom_call.1} parent=71 // pred_region
          %485 = dma.done %s478, 256
        $region76: #{tpu_custom_call.1} parent=71 // pred_fallthru
          _
        // Predicated region
        $region77: #{tpu_custom_call.1} parent=71 // pred_check
          %p486 = pneg %p87
        $region78: #{tpu_custom_call.1} parent=71 // pred_check_branch
          %488 = sbr.rel (%p486) target = $region80
        $region79: #{tpu_custom_call.1} parent=71 // pred_region
          %489 = dma.done [#allocation9], 3072
        $region80: #{tpu_custom_call.1} parent=71 // pred_fallthru
          _
        // Predicated region
        $region81: #{tpu_custom_call.1} parent=71 // pred_check
          %p490 = pneg %p129
        $region82: #{tpu_custom_call.1} parent=71 // pred_check_branch
          %492 = sbr.rel (%p490) target = $region84
        $region83: #{tpu_custom_call.1} parent=71 // pred_region
          %493 = dma.done [#allocation9], 1024
        $region84: #{tpu_custom_call.1} parent=71 // pred_fallthru
          _
        // Predicated region
        $region85: #{tpu_custom_call.1} parent=71 // pred_check
          %p494 = pneg %p150
        $region86: #{tpu_custom_call.1} parent=71 // pred_check_branch
          %496 = sbr.rel (%p494) target = $region88
        $region87: #{tpu_custom_call.1} parent=71 // pred_region
          %497 = dma.done [#allocation12], 16
        $region88: #{tpu_custom_call.1} parent=71 // pred_fallthru
          _
        // Predicated region
        $region89: #{tpu_custom_call.1} parent=71 // pred_check
          %p498 = pneg %p213
        $region90: #{tpu_custom_call.1} parent=71 // pred_check_branch
          %500 = sbr.rel (%p498) target = $region92
        $region91: #{tpu_custom_call.1} parent=71 // pred_region
          %501 = dma.done [#allocation12], 4096
        $region92: #{tpu_custom_call.1} parent=71 // pred_fallthru
          _
        // Predicated region
        $region93: #{tpu_custom_call.1} parent=71 // pred_check
          %p502 = pneg %p255
        $region94: #{tpu_custom_call.1} parent=71 // pred_check_branch
          %504 = sbr.rel (%p502) target = $region96
        $region95: #{tpu_custom_call.1} parent=71 // pred_region
          %505 = dma.done [#allocation15], 4096
        $region96: #{tpu_custom_call.1} parent=71 // pred_fallthru
          _
        %s506 = sand.u32 %s53, 1
        %s507 = scalar_lea.sflag [#allocation6], %s506
        %s508 = sand.u32 %s53, 1
        %s509 = smul.addr %s508, 16
        %s510 = scalar_lea.vmem [#allocation5], %s509
        %p511 = pneg %p66
        %p512 = pneg %p63
        %p513 = pneg %p87
        %p514 = pneg %p84
        %p515 = pneg %p108
        %p516 = pneg %p105
        %p517 = pneg %p129
        %p518 = pneg %p126
        %p519 = pneg %p150
        %p520 = pneg %p147
        %p521 = pneg %p171
        %p522 = pneg %p168
        %p523 = pneg %p192
        %p524 = pneg %p189
        %p525 = pneg %p213
        %p526 = pneg %p210
        %p527 = pneg %p234
        %p528 = pneg %p231
        %p529 = pneg %p255
        %p530 = pneg %p252
        %p531 = pneg %p276
        %p532 = pneg %p273
        %p533 = pneg %p297
        %p534 = pneg %p294
        %p535 = pneg %p318
        %p536 = pneg %p315
        %p537 = pneg %p346
        %p538 = pneg %p343
        %s539 = sand.u32 %s333, 1
        %s540 = scalar_lea.sflag [#allocation7], %s539
        %s541 = sand.u32 %s333, 1
        %s542 = smul.addr %s541, 8
        %s543 = scalar_lea.vmem [#allocation16], %s542
        %p545 = scmp.eq.s32.totalorder %s38, 0
        // Predicated region
        $region97: #{tpu_custom_call.1} parent=71 // pred_check
          %p546 = pneg %p545
        $region98: #{tpu_custom_call.1} parent=71 // pred_check_branch
          %548 = sbr.rel (%p546) target = $region100
        $region99: #{tpu_custom_call.1} parent=71 // pred_region
          %v549 = vld [vmem:[%s481] sm:$0xff]
          %v550 = vld [vmem:[%s481 + $0x8] sm:$0xff]
          %v551 = vpack.c.bf16 %v550, %v549
          %v552 = vld [vmem:[#allocation8] sm:$0xff]
          %v553 = vld [vmem:[#allocation8 + $0x8] sm:$0xf]
          %v554 = vld [vmem:[#allocation8 + $0xc] sm:$0xff]
          %v555 = vld [vmem:[#allocation8 + $0x14] sm:$0xf]
          %v556 = vld [vmem:[#allocation8 + $0x18] sm:$0xff]
          %v557 = vld [vmem:[#allocation8 + $0x20] sm:$0xf]
          %v558 = vld [vmem:[#allocation8 + $0x24] sm:$0xff]
          %v559 = vld [vmem:[#allocation8 + $0x2c] sm:$0xf]
          %v560 = vld [vmem:[#allocation8 + $0x30] sm:$0xff]
          %v561 = vld [vmem:[#allocation8 + $0x38] sm:$0xf]
          %v562 = vld [vmem:[#allocation8 + $0x3c] sm:$0xff]
          %v563 = vld [vmem:[#allocation8 + $0x44] sm:$0xf]
          %v564 = vld [vmem:[#allocation8 + $0x48] sm:$0xff]
          %v565 = vld [vmem:[#allocation8 + $0x50] sm:$0xf]
          %v566 = vld [vmem:[#allocation8 + $0x54] sm:$0xff]
          %v567 = vld [vmem:[#allocation8 + $0x5c] sm:$0xf]
          %v568 = vld [vmem:[#allocation8 + $0x60] sm:$0xff]
          %v569 = vld [vmem:[#allocation8 + $0x68] sm:$0xf]
          %v570 = vld [vmem:[#allocation8 + $0x6c] sm:$0xff]
          %v571 = vld [vmem:[#allocation8 + $0x74] sm:$0xf]
          %v572 = vld [vmem:[#allocation8 + $0x78] sm:$0xff]
          %v573 = vld [vmem:[#allocation8 + $0x80] sm:$0xf]
          %v574 = vld [vmem:[#allocation8 + $0x84] sm:$0xff]
          %v575 = vld [vmem:[#allocation8 + $0x8c] sm:$0xf]
          %v576 = vld [vmem:[#allocation8 + $0x90] sm:$0xff]
          %v577 = vld [vmem:[#allocation8 + $0x98] sm:$0xf]
          %v578 = vld [vmem:[#allocation8 + $0x9c] sm:$0xff]
          %v579 = vld [vmem:[#allocation8 + $0xa4] sm:$0xf]
          %v580 = vld [vmem:[#allocation8 + $0xa8] sm:$0xff]
          %v581 = vld [vmem:[#allocation8 + $0xb0] sm:$0xf]
          %v582 = vld [vmem:[#allocation8 + $0xb4] sm:$0xff]
          %v583 = vld [vmem:[#allocation8 + $0xbc] sm:$0xf]
          %v584 = vld [vmem:[%s2] sm:$0x7]
          %v586 = vlaneseq
          %v587 = vshrl.u32 %v586, 7
          %v588 = vsub.s32 0, %v587
          %v589 = vrot.slane %v584, %v588
          %v590 = vlaneseq
          %v591 = vshrl.u32 %v590, 7
          %v592 = vsub.s32 1, %v591
          %v593 = vrot.slane %v584, %v592
          %v594 = vlaneseq
          %v595 = vshrl.u32 %v594, 7
          %v596 = vsub.s32 2, %v595
          %v597 = vrot.slane %v584, %v596
          %v633 = vunpack.c.l.b16 %v552
          %v634 = vunpack.c.h.b16 %v552
          %v635 = vunpack.c.l.b16 %v553
          %v636 = vunpack.c.l.b16 %v554
          %v637 = vunpack.c.h.b16 %v554
          %v638 = vunpack.c.l.b16 %v555
          %v639 = vunpack.c.l.b16 %v556
          %v640 = vunpack.c.h.b16 %v556
          %v641 = vunpack.c.l.b16 %v557
          %v642 = vunpack.c.l.b16 %v558
          %v643 = vunpack.c.h.b16 %v558
          %v644 = vunpack.c.l.b16 %v559
          %v645 = vunpack.c.l.b16 %v560
          %v646 = vunpack.c.h.b16 %v560
          %v647 = vunpack.c.l.b16 %v561
          %v648 = vunpack.c.l.b16 %v562
          %v649 = vunpack.c.h.b16 %v562
          %v650 = vunpack.c.l.b16 %v563
          %v651 = vunpack.c.l.b16 %v564
          %v652 = vunpack.c.h.b16 %v564
          %v653 = vunpack.c.l.b16 %v565
          %v654 = vunpack.c.l.b16 %v566
          %v655 = vunpack.c.h.b16 %v566
          %v656 = vunpack.c.l.b16 %v567
          %v657 = vunpack.c.l.b16 %v568
          %v658 = vunpack.c.h.b16 %v568
          %v659 = vunpack.c.l.b16 %v569
          %v660 = vunpack.c.l.b16 %v570
          %v661 = vunpack.c.h.b16 %v570
          %v662 = vunpack.c.l.b16 %v571
          %v663 = vunpack.c.l.b16 %v572
          %v664 = vunpack.c.h.b16 %v572
          %v665 = vunpack.c.l.b16 %v573
          %v666 = vunpack.c.l.b16 %v574
          %v667 = vunpack.c.h.b16 %v574
          %v668 = vunpack.c.l.b16 %v575
          %v669 = vunpack.c.l.b16 %v576
          %v670 = vunpack.c.h.b16 %v576
          %v671 = vunpack.c.l.b16 %v577
          %v672 = vunpack.c.l.b16 %v578
          %v673 = vunpack.c.h.b16 %v578
          %v674 = vunpack.c.l.b16 %v579
          %v675 = vunpack.c.l.b16 %v580
          %v676 = vunpack.c.h.b16 %v580
          %v677 = vunpack.c.l.b16 %v581
          %v678 = vunpack.c.l.b16 %v582
          %v679 = vunpack.c.h.b16 %v582
          %v680 = vunpack.c.l.b16 %v583
          %v681 = vpack.c.b16 %v636, %v633
          %v682 = vpack.c.b16 %v637, %v634
          %v683 = vpack.c.b16 %v638, %v635
          %v684 = vpack.c.b16 %v642, %v639
          %v685 = vpack.c.b16 %v643, %v640
          %v686 = vpack.c.b16 %v644, %v641
          %v687 = vpack.c.b16 %v648, %v645
          %v688 = vpack.c.b16 %v649, %v646
          %v689 = vpack.c.b16 %v650, %v647
          %v690 = vpack.c.b16 %v654, %v651
          %v691 = vpack.c.b16 %v655, %v652
          %v692 = vpack.c.b16 %v656, %v653
          %v693 = vpack.c.b16 %v660, %v657
          %v694 = vpack.c.b16 %v661, %v658
          %v695 = vpack.c.b16 %v662, %v659
          %v696 = vpack.c.b16 %v666, %v663
          %v697 = vpack.c.b16 %v667, %v664
          %v698 = vpack.c.b16 %v668, %v665
          %v699 = vpack.c.b16 %v672, %v669
          %v700 = vpack.c.b16 %v673, %v670
          %v701 = vpack.c.b16 %v674, %v671
          %v702 = vpack.c.b16 %v678, %v675
          %v703 = vpack.c.b16 %v679, %v676
          %v704 = vpack.c.b16 %v680, %v677
          %729 = vmatprep.subr.bf16.mxu0 %v703
          %730 = vmatpush1.bf16.msra.mxu0 %v702
          %731 = vmatprep.subr.bf16.mxu0 %v700
          %732 = vmatpush1.bf16.msra.mxu0 %v699
          %733 = vmatprep.subr.bf16.mxu0 %v697
          %734 = vmatpush1.bf16.msra.mxu0 %v696
          %735 = vmatprep.subr.bf16.mxu0 %v694
          %736 = vmatpush1.bf16.msra.mxu0 %v693
          %737 = vmatprep.subr.bf16.mxu0 %v691
          %738 = vmatpush1.bf16.msra.mxu0 %v690
          %739 = vmatprep.subr.bf16.mxu0 %v688
          %740 = vmatpush1.bf16.msra.mxu0 %v687
          %741 = vmatprep.subr.bf16.mxu0 %v685
          %742 = vmatpush1.bf16.msra.mxu0 %v684
          %743 = vmatprep.subr.bf16.mxu0 %v682
          %744 = vmatpush1.bf16.msra.mxu0 %v681
          %745 = vmatprep.subr.bf16.mxu0 0
          %746 = vmatpush2.bf16.msra.mxu0 0
          %747 = vmatprep.subr.bf16.mxu0 0
          %748 = vmatpush2.bf16.msra.mxu0 0
          %749 = vmatprep.subr.bf16.mxu0 0
          %750 = vmatpush2.bf16.msra.mxu0 0
          %751 = vmatprep.subr.bf16.mxu0 0
          %752 = vmatpush2.bf16.msra.mxu0 0
          %753 = vmatprep.subr.bf16.mxu0 0
          %754 = vmatpush2.bf16.msra.mxu0 0
          %755 = vmatprep.subr.bf16.mxu0 0
          %756 = vmatpush2.bf16.msra.mxu0 0
          %757 = vmatprep.subr.bf16.mxu0 0
          %758 = vmatpush2.bf16.msra.mxu0 0
          %759 = vmatprep.subr.bf16.mxu0 0
          %760 = vmatpush2.bf16.msra.mxu0 0
          %761 = vmatprep.mubr.bf16.mxu0 0
          %762 = vmatmul.mubr.bf16.gmra.mxu0 %v551
          %v763 = vpop.f32.mrf.mxu0
          %v764 = vadd.f32 %v589, %v763
          %v765 = vpop.f32.mrf.mxu0
          %v766 = vadd.f32 %v593, %v765
          %v767 = vpop.f32.mrf.mxu0
          %v768 = vadd.f32 %v589, %v767
          %v769 = vpop.f32.mrf.mxu0
          %v770 = vadd.f32 %v593, %v769
          %771 = vdwg.mxu0
          %772 = vmatprep.subr.bf16.mxu0 0
          %773 = vmatpush1.bf16.msra.mxu0 %v704
          %774 = vmatprep.subr.bf16.mxu0 0
          %775 = vmatpush1.bf16.msra.mxu0 %v701
          %776 = vmatprep.subr.bf16.mxu0 0
          %777 = vmatpush1.bf16.msra.mxu0 %v698
          %778 = vmatprep.subr.bf16.mxu0 0
          %779 = vmatpush1.bf16.msra.mxu0 %v695
          %780 = vmatprep.subr.bf16.mxu0 0
          %781 = vmatpush1.bf16.msra.mxu0 %v692
          %782 = vmatprep.subr.bf16.mxu0 0
          %783 = vmatpush1.bf16.msra.mxu0 %v689
          %784 = vmatprep.subr.bf16.mxu0 0
          %785 = vmatpush1.bf16.msra.mxu0 %v686
          %786 = vmatprep.subr.bf16.mxu0 0
          %787 = vmatpush1.bf16.msra.mxu0 %v683
          %788 = vmatprep.subr.bf16.mxu0 0
          %789 = vmatpush2.bf16.msra.mxu0 0
          %790 = vmatprep.subr.bf16.mxu0 0
          %791 = vmatpush2.bf16.msra.mxu0 0
          %792 = vmatprep.subr.bf16.mxu0 0
          %793 = vmatpush2.bf16.msra.mxu0 0
          %794 = vmatprep.subr.bf16.mxu0 0
          %795 = vmatpush2.bf16.msra.mxu0 0
          %796 = vmatprep.subr.bf16.mxu0 0
          %797 = vmatpush2.bf16.msra.mxu0 0
          %798 = vmatprep.subr.bf16.mxu0 0
          %799 = vmatpush2.bf16.msra.mxu0 0
          %800 = vmatprep.subr.bf16.mxu0 0
          %801 = vmatpush2.bf16.msra.mxu0 0
          %802 = vmatprep.subr.bf16.mxu0 0
          %803 = vmatpush2.bf16.msra.mxu0 0
          %804 = vmatprep.mubr.bf16.mxu0 0
          %805 = vmatmul.mubr.bf16.gmra.mxu0 %v551
          %v806 = vpop.f32.mrf.mxu0
          %v807 = vadd.f32 %v597, %v806
          %v808 = vpop.f32.mrf.mxu0
          %v809 = vpop.f32.mrf.mxu0
          %v810 = vadd.f32 %v597, %v809
          %v811 = vpop.f32.mrf.mxu0
          %812 = vdwg.mxu0
          %v813 = vpack.c.bf16 %v768, %v764
          %v814 = vpack.c.bf16 %v770, %v766
          %v815 = vpack.c.bf16 %v810, %v807
          %817 = vrot.lane.b32.xlu0 %v813, 64
          %v818 = vpop.permute.xlu0 %817
          %v819 = vunpack.c.l.b16 %v813
          %v820 = vunpack.c.h.b16 %v813
          %v821 = vunpack.c.l.b16 %v818
          %v822 = vunpack.c.h.b16 %v818
          %v823 = vpack.c.b16 %v819, %v819
          %v824 = vpack.c.b16 %v820, %v820
          %v825 = vpack.c.b16 %v821, %v821
          %v826 = vpack.c.b16 %v822, %v822
          %vm831 = vcmask 519168
          %832 = vst.msk [vmem:[#allocation2] sm:$0xf] %vm831, %v823
          %833 = vst.msk [vmem:[#allocation2 + $0x4] sm:$0xf] %vm831, %v824
          %834 = vst.msk [vmem:[#allocation2 + $0x8] sm:$0xf] %vm831, %v825
          %835 = vst.msk [vmem:[#allocation2 + $0xc] sm:$0xf] %vm831, %v826
          %837 = vrot.lane.b32.xlu0 %v814, 64
          %v838 = vpop.permute.xlu0 %837
          %v839 = vunpack.c.l.b16 %v814
          %v840 = vunpack.c.h.b16 %v814
          %v841 = vunpack.c.l.b16 %v838
          %v842 = vunpack.c.h.b16 %v838
          %v843 = vpack.c.b16 %v839, %v839
          %v844 = vpack.c.b16 %v840, %v840
          %v845 = vpack.c.b16 %v841, %v841
          %v846 = vpack.c.b16 %v842, %v842
          %851 = vst.msk [vmem:[#allocation3] sm:$0xf] %vm831, %v843
          %852 = vst.msk [vmem:[#allocation3 + $0x4] sm:$0xf] %vm831, %v844
          %853 = vst.msk [vmem:[#allocation3 + $0x8] sm:$0xf] %vm831, %v845
          %854 = vst.msk [vmem:[#allocation3 + $0xc] sm:$0xf] %vm831, %v846
          %856 = vrot.lane.b32.xlu0 %v815, 64
          %v857 = vpop.permute.xlu0 %856
          %v858 = vunpack.c.l.b16 %v815
          %v859 = vunpack.c.h.b16 %v815
          %v860 = vunpack.c.l.b16 %v857
          %v861 = vunpack.c.h.b16 %v857
          %v862 = vpack.c.b16 %v858, %v858
          %v863 = vpack.c.b16 %v859, %v859
          %v864 = vpack.c.b16 %v860, %v860
          %v865 = vpack.c.b16 %v861, %v861
          %870 = vst.msk [vmem:[#allocation4] sm:$0xf] %vm831, %v862
          %871 = vst.msk [vmem:[#allocation4 + $0x4] sm:$0xf] %vm831, %v863
          %872 = vst.msk [vmem:[#allocation4 + $0x8] sm:$0xf] %vm831, %v864
          %873 = vst.msk [vmem:[#allocation4 + $0xc] sm:$0xf] %vm831, %v865
        $region100: #{tpu_custom_call.1} parent=71 // pred_fallthru
          _
        %s874 = smul.u32 %s38, 8
        %s875 = sshra.s32 %s874, 3
        %s876 = sand.u32 %s874, 7
        %s877 = smul.addr %s875, 4
        %s878 = scalar_lea.vmem [#allocation2], %s877
        %v879 = vld [vmem:[%s878] sm:$0xf]
        %v880 = vld [vmem:[%s878 + $0x8] sm:$0xf]
        %v881 = vld [vmem:[#allocation3] sm:$0xf]
        %v882 = vld [vmem:[#allocation3 + $0x4] sm:$0xf]
        %v883 = vld [vmem:[#allocation3 + $0x8] sm:$0xf]
        %v884 = vld [vmem:[#allocation3 + $0xc] sm:$0xf]
        %v885 = vld [vmem:[#allocation4] sm:$0xf]
        %v886 = vld [vmem:[#allocation4 + $0x4] sm:$0xf]
        %v887 = vld [vmem:[#allocation4 + $0x8] sm:$0xf]
        %v888 = vld [vmem:[#allocation4 + $0xc] sm:$0xf]
        %v891 = vunpack.c.l.b16 %v881
        %v892 = vunpack.c.l.b16 %v882
        %v893 = vpack.c.b16 %v892, %v891
        %vm894 = vcmask 523264
        %v896 = vsel %vm894, %v879, 0
        %v899 = vsel %vm894, %v893, 0
        %901 = vmatprep.subr.bf16.mxu0 0
        %902 = vmatpush1.bf16.xpose.msra.mxu0 0
        %903 = vmatprep.subr.bf16.mxu0 0
        %904 = vmatpush1.bf16.xpose.msra.mxu0 0
        %905 = vmatprep.subr.bf16.mxu0 0
        %906 = vmatpush1.bf16.xpose.msra.mxu0 0
        %907 = vmatprep.subr.bf16.mxu0 0
        %908 = vmatpush1.bf16.xpose.msra.mxu0 0
        %909 = vmatprep.subr.bf16.mxu0 0
        %910 = vmatpush1.bf16.xpose.msra.mxu0 0
        %911 = vmatprep.subr.bf16.mxu0 0
        %912 = vmatpush1.bf16.xpose.msra.mxu0 0
        %913 = vmatprep.subr.bf16.mxu0 0
        %914 = vmatpush1.bf16.xpose.msra.mxu0 0
        %915 = vmatprep.subr.bf16.mxu0 0
        %916 = vmatpush1.bf16.xpose.msra.mxu0 %v899
        %917 = vmatprep.subr.bf16.mxu0 0
        %918 = vmatpush2.bf16.xpose.msra.mxu0 0
        %919 = vmatprep.subr.bf16.mxu0 0
        %920 = vmatpush2.bf16.xpose.msra.mxu0 0
        %921 = vmatprep.subr.bf16.mxu0 0
        %922 = vmatpush2.bf16.xpose.msra.mxu0 0
        %923 = vmatprep.subr.bf16.mxu0 0
        %924 = vmatpush2.bf16.xpose.msra.mxu0 0
        %925 = vmatprep.subr.bf16.mxu0 0
        %926 = vmatpush2.bf16.xpose.msra.mxu0 0
        %927 = vmatprep.subr.bf16.mxu0 0
        %928 = vmatpush2.bf16.xpose.msra.mxu0 0
        %929 = vmatprep.subr.bf16.mxu0 0
        %930 = vmatpush2.bf16.xpose.msra.mxu0 0
        %931 = vmatprep.subr.bf16.mxu0 0
        %932 = vmatpush2.bf16.xpose.msra.mxu0 0
        %933 = vmatprep.mubr.bf16.mxu0 0
        %934 = vmatmul.mubr.bf16.gmra.mxu0 %v896
        %v935 = vpop.f32.mrf.mxu0
        %v936 = vadd.f32 0.0, %v935
        %v937 = vpop.f32.mrf.mxu0
        %v938 = vpop.f32.mrf.mxu0
        %v939 = vpop.f32.mrf.mxu0
        %940 = vdwg.mxu0
        %v943 = vunpack.c.l.b16 %v883
        %v944 = vunpack.c.l.b16 %v884
        %v945 = vpack.c.b16 %v944, %v943
        %v947 = vsel %vm894, %v880, 0
        %v950 = vsel %vm894, %v945, 0
        %952 = vmatprep.subr.bf16.mxu0 0
        %953 = vmatpush1.bf16.xpose.msra.mxu0 0
        %954 = vmatprep.subr.bf16.mxu0 0
        %955 = vmatpush1.bf16.xpose.msra.mxu0 0
        %956 = vmatprep.subr.bf16.mxu0 0
        %957 = vmatpush1.bf16.xpose.msra.mxu0 0
        %958 = vmatprep.subr.bf16.mxu0 0
        %959 = vmatpush1.bf16.xpose.msra.mxu0 0
        %960 = vmatprep.subr.bf16.mxu0 0
        %961 = vmatpush1.bf16.xpose.msra.mxu0 0
        %962 = vmatprep.subr.bf16.mxu0 0
        %963 = vmatpush1.bf16.xpose.msra.mxu0 0
        %964 = vmatprep.subr.bf16.mxu0 0
        %965 = vmatpush1.bf16.xpose.msra.mxu0 0
        %966 = vmatprep.subr.bf16.mxu0 0
        %967 = vmatpush1.bf16.xpose.msra.mxu0 %v950
        %968 = vmatprep.subr.bf16.mxu0 0
        %969 = vmatpush2.bf16.xpose.msra.mxu0 0
        %970 = vmatprep.subr.bf16.mxu0 0
        %971 = vmatpush2.bf16.xpose.msra.mxu0 0
        %972 = vmatprep.subr.bf16.mxu0 0
        %973 = vmatpush2.bf16.xpose.msra.mxu0 0
        %974 = vmatprep.subr.bf16.mxu0 0
        %975 = vmatpush2.bf16.xpose.msra.mxu0 0
        %976 = vmatprep.subr.bf16.mxu0 0
        %977 = vmatpush2.bf16.xpose.msra.mxu0 0
        %978 = vmatprep.subr.bf16.mxu0 0
        %979 = vmatpush2.bf16.xpose.msra.mxu0 0
        %980 = vmatprep.subr.bf16.mxu0 0
        %981 = vmatpush2.bf16.xpose.msra.mxu0 0
        %982 = vmatprep.subr.bf16.mxu0 0
        %983 = vmatpush2.bf16.xpose.msra.mxu0 0
        %984 = vmatprep.mubr.bf16.mxu0 0
        %985 = vmatmul.mubr.bf16.gmra.mxu0 %v947
        %v986 = vpop.f32.mrf.mxu0
        %v987 = vadd.f32 0.0, %v986
        %v988 = vpop.f32.mrf.mxu0
        %v989 = vpop.f32.mrf.mxu0
        %v990 = vpop.f32.mrf.mxu0
        %991 = vdwg.mxu0
        %vm992 = vcmask 130048
        %v993 = vsel %vm992, %v936, -inf
        %994 = vmax.xlane.f32.xlu0 %v993
        %v995 = vpop.xlane.xlu0 %994
        %v996 = vsel %vm992, %v987, -inf
        %997 = vmax.xlane.f32.xlu0 %v996
        %v998 = vpop.xlane.xlu0 %997
        %v999 = vsub.f32 %v936, %v995
        %v1000 = vsub.f32 %v987, %v998
        %v1001 = vmul.f32 %v999, 1.442695
        %v1002 = vpow.pop %v1001
        %v1003 = vmul.f32 %v1000, 1.442695
        %v1004 = vpow.pop %v1003
        %v1005 = vsel %vm992, %v1002, 0.0
        %1006 = vadd.xlane.f32.xlu0 %v1005
        %v1007 = vpop.xlane.xlu0 %1006
        %v1008 = vsel %vm992, %v1004, 0.0
        %1009 = vadd.xlane.f32.xlu0 %v1008
        %v1010 = vpop.xlane.xlu0 %1009
        %v1011 = vrcp.pop %v1007
        %v1012 = vrcp.pop %v1010
        %v1013 = vmul.f32 %v1002, %v1011
        %v1014 = vmul.f32 %v1004, %v1012
        %v1015 = vpack.c.bf16 %v1013, %v1013
        %v1016 = vpack.c.bf16 %v1014, %v1014
        %v1019 = vunpack.c.l.b16 %v885
        %v1020 = vunpack.c.l.b16 %v886
        %v1021 = vpack.c.b16 %v1020, %v1019
        %v1024 = vsel %vm992, %v1015, 0
        %1026 = vmatprep.subr.bf16.mxu0 0
        %1027 = vmatpush1.bf16.msra.mxu0 0
        %1028 = vmatprep.subr.bf16.mxu0 0
        %1029 = vmatpush1.bf16.msra.mxu0 0
        %1030 = vmatprep.subr.bf16.mxu0 0
        %1031 = vmatpush1.bf16.msra.mxu0 0
        %1032 = vmatprep.subr.bf16.mxu0 0
        %1033 = vmatpush1.bf16.msra.mxu0 0
        %1034 = vmatprep.subr.bf16.mxu0 0
        %1035 = vmatpush1.bf16.msra.mxu0 0
        %1036 = vmatprep.subr.bf16.mxu0 0
        %1037 = vmatpush1.bf16.msra.mxu0 0
        %1038 = vmatprep.subr.bf16.mxu0 0
        %1039 = vmatpush1.bf16.msra.mxu0 0
        %1040 = vmatprep.subr.bf16.mxu0 0
        %1041 = vmatpush1.bf16.msra.mxu0 %v1021
        %1042 = vmatprep.subr.bf16.mxu0 0
        %1043 = vmatpush2.bf16.msra.mxu0 0
        %1044 = vmatprep.subr.bf16.mxu0 0
        %1045 = vmatpush2.bf16.msra.mxu0 0
        %1046 = vmatprep.subr.bf16.mxu0 0
        %1047 = vmatpush2.bf16.msra.mxu0 0
        %1048 = vmatprep.subr.bf16.mxu0 0
        %1049 = vmatpush2.bf16.msra.mxu0 0
        %1050 = vmatprep.subr.bf16.mxu0 0
        %1051 = vmatpush2.bf16.msra.mxu0 0
        %1052 = vmatprep.subr.bf16.mxu0 0
        %1053 = vmatpush2.bf16.msra.mxu0 0
        %1054 = vmatprep.subr.bf16.mxu0 0
        %1055 = vmatpush2.bf16.msra.mxu0 0
        %1056 = vmatprep.subr.bf16.mxu0 0
        %1057 = vmatpush2.bf16.msra.mxu0 0
        %1058 = vmatprep.mubr.bf16.mxu0 0
        %1059 = vmatmul.mubr.bf16.gmra.mxu0 %v1024
        %v1060 = vpop.f32.mrf.mxu0
        %v1061 = vadd.f32 0.0, %v1060
        %v1062 = vpop.f32.mrf.mxu0
        %v1063 = vpop.f32.mrf.mxu0
        %v1064 = vpop.f32.mrf.mxu0
        %1065 = vdwg.mxu0
        %v1068 = vunpack.c.l.b16 %v887
        %v1069 = vunpack.c.l.b16 %v888
        %v1070 = vpack.c.b16 %v1069, %v1068
        %v1073 = vsel %vm992, %v1016, 0
        %1075 = vmatprep.subr.bf16.mxu0 0
        %1076 = vmatpush1.bf16.msra.mxu0 0
        %1077 = vmatprep.subr.bf16.mxu0 0
        %1078 = vmatpush1.bf16.msra.mxu0 0
        %1079 = vmatprep.subr.bf16.mxu0 0
        %1080 = vmatpush1.bf16.msra.mxu0 0
        %1081 = vmatprep.subr.bf16.mxu0 0
        %1082 = vmatpush1.bf16.msra.mxu0 0
        %1083 = vmatprep.subr.bf16.mxu0 0
        %1084 = vmatpush1.bf16.msra.mxu0 0
        %1085 = vmatprep.subr.bf16.mxu0 0
        %1086 = vmatpush1.bf16.msra.mxu0 0
        %1087 = vmatprep.subr.bf16.mxu0 0
        %1088 = vmatpush1.bf16.msra.mxu0 0
        %1089 = vmatprep.subr.bf16.mxu0 0
        %1090 = vmatpush1.bf16.msra.mxu0 %v1070
        %1091 = vmatprep.subr.bf16.mxu0 0
        %1092 = vmatpush2.bf16.msra.mxu0 0
        %1093 = vmatprep.subr.bf16.mxu0 0
        %1094 = vmatpush2.bf16.msra.mxu0 0
        %1095 = vmatprep.subr.bf16.mxu0 0
        %1096 = vmatpush2.bf16.msra.mxu0 0
        %1097 = vmatprep.subr.bf16.mxu0 0
        %1098 = vmatpush2.bf16.msra.mxu0 0
        %1099 = vmatprep.subr.bf16.mxu0 0
        %1100 = vmatpush2.bf16.msra.mxu0 0
        %1101 = vmatprep.subr.bf16.mxu0 0
        %1102 = vmatpush2.bf16.msra.mxu0 0
        %1103 = vmatprep.subr.bf16.mxu0 0
        %1104 = vmatpush2.bf16.msra.mxu0 0
        %1105 = vmatprep.subr.bf16.mxu0 0
        %1106 = vmatpush2.bf16.msra.mxu0 0
        %1107 = vmatprep.mubr.bf16.mxu0 0
        %1108 = vmatmul.mubr.bf16.gmra.mxu0 %v1073
        %v1109 = vpop.f32.mrf.mxu0
        %v1110 = vadd.f32 0.0, %v1109
        %v1111 = vpop.f32.mrf.mxu0
        %v1112 = vpop.f32.mrf.mxu0
        %v1113 = vpop.f32.mrf.mxu0
        %1114 = vdwg.mxu0
        %v1115 = vpack.c.bf16 %v1061, %v1061
        %v1116 = vpack.c.bf16 %v1110, %v1110
        %1118 = vrot.lane.b32.xlu0 %v1116, 64
        %v1119 = vpop.permute.xlu0 %1118
        %v1122 = vsel %vm894, %v1115, %v1119
        %v1124 = vld [vmem:[#allocation10] sm:$0xf]
        %v1125 = vld [vmem:[#allocation10 + $0x4] sm:$0xf]
        %v1126 = vld [vmem:[#allocation10 + $0x8] sm:$0xf]
        %v1127 = vld [vmem:[#allocation10 + $0xc] sm:$0xf]
        %v1128 = vld [vmem:[#allocation10 + $0x10] sm:$0xf]
        %v1129 = vld [vmem:[#allocation10 + $0x14] sm:$0xf]
        %v1130 = vld [vmem:[#allocation10 + $0x18] sm:$0xf]
        %v1131 = vld [vmem:[#allocation10 + $0x1c] sm:$0xf]
        %v1132 = vld [vmem:[#allocation10 + $0x20] sm:$0xf]
        %v1133 = vld [vmem:[#allocation10 + $0x24] sm:$0xf]
        %v1134 = vld [vmem:[#allocation10 + $0x28] sm:$0xf]
        %v1135 = vld [vmem:[#allocation10 + $0x2c] sm:$0xf]
        %v1136 = vld [vmem:[#allocation10 + $0x30] sm:$0xf]
        %v1137 = vld [vmem:[#allocation10 + $0x34] sm:$0xf]
        %v1138 = vld [vmem:[#allocation10 + $0x38] sm:$0xf]
        %v1139 = vld [vmem:[#allocation10 + $0x3c] sm:$0xf]
        %v1140 = vld [vmem:[#allocation11] sm:$0x1]
        %v1142 = vlaneseq
        %v1143 = vshrl.u32 %v1142, 7
        %v1144 = vsub.s32 0, %v1143
        %v1145 = vrot.slane %v1140, %v1144
        %v1163 = vunpack.c.l.b16 %v1124
        %v1164 = vunpack.c.l.b16 %v1125
        %v1165 = vunpack.c.l.b16 %v1126
        %v1166 = vunpack.c.l.b16 %v1127
        %v1167 = vunpack.c.l.b16 %v1128
        %v1168 = vunpack.c.l.b16 %v1129
        %v1169 = vunpack.c.l.b16 %v1130
        %v1170 = vunpack.c.l.b16 %v1131
        %v1171 = vunpack.c.l.b16 %v1132
        %v1172 = vunpack.c.l.b16 %v1133
        %v1173 = vunpack.c.l.b16 %v1134
        %v1174 = vunpack.c.l.b16 %v1135
        %v1175 = vunpack.c.l.b16 %v1136
        %v1176 = vunpack.c.l.b16 %v1137
        %v1177 = vunpack.c.l.b16 %v1138
        %v1178 = vunpack.c.l.b16 %v1139
        %v1179 = vpack.c.b16 %v1164, %v1163
        %v1180 = vpack.c.b16 %v1166, %v1165
        %v1181 = vpack.c.b16 %v1168, %v1167
        %v1182 = vpack.c.b16 %v1170, %v1169
        %v1183 = vpack.c.b16 %v1172, %v1171
        %v1184 = vpack.c.b16 %v1174, %v1173
        %v1185 = vpack.c.b16 %v1176, %v1175
        %v1186 = vpack.c.b16 %v1178, %v1177
        %1195 = vmatprep.subr.bf16.mxu0 0
        %1196 = vmatpush1.bf16.msra.mxu0 %v1186
        %1197 = vmatprep.subr.bf16.mxu0 0
        %1198 = vmatpush1.bf16.msra.mxu0 %v1185
        %1199 = vmatprep.subr.bf16.mxu0 0
        %1200 = vmatpush1.bf16.msra.mxu0 %v1184
        %1201 = vmatprep.subr.bf16.mxu0 0
        %1202 = vmatpush1.bf16.msra.mxu0 %v1183
        %1203 = vmatprep.subr.bf16.mxu0 0
        %1204 = vmatpush1.bf16.msra.mxu0 %v1182
        %1205 = vmatprep.subr.bf16.mxu0 0
        %1206 = vmatpush1.bf16.msra.mxu0 %v1181
        %1207 = vmatprep.subr.bf16.mxu0 0
        %1208 = vmatpush1.bf16.msra.mxu0 %v1180
        %1209 = vmatprep.subr.bf16.mxu0 0
        %1210 = vmatpush1.bf16.msra.mxu0 %v1179
        %1211 = vmatprep.subr.bf16.mxu0 0
        %1212 = vmatpush2.bf16.msra.mxu0 0
        %1213 = vmatprep.subr.bf16.mxu0 0
        %1214 = vmatpush2.bf16.msra.mxu0 0
        %1215 = vmatprep.subr.bf16.mxu0 0
        %1216 = vmatpush2.bf16.msra.mxu0 0
        %1217 = vmatprep.subr.bf16.mxu0 0
        %1218 = vmatpush2.bf16.msra.mxu0 0
        %1219 = vmatprep.subr.bf16.mxu0 0
        %1220 = vmatpush2.bf16.msra.mxu0 0
        %1221 = vmatprep.subr.bf16.mxu0 0
        %1222 = vmatpush2.bf16.msra.mxu0 0
        %1223 = vmatprep.subr.bf16.mxu0 0
        %1224 = vmatpush2.bf16.msra.mxu0 0
        %1225 = vmatprep.subr.bf16.mxu0 0
        %1226 = vmatpush2.bf16.msra.mxu0 0
        %1227 = vmatprep.mubr.bf16.mxu0 0
        %1228 = vmatmul.mubr.bf16.gmra.mxu0 %v1122
        %v1229 = vpop.f32.mrf.mxu0
        %v1230 = vadd.f32 %v1145, %v1229
        %v1231 = vpop.f32.mrf.mxu0
        %v1232 = vpop.f32.mrf.mxu0
        %v1233 = vpop.f32.mrf.mxu0
        %1234 = vdwg.mxu0
        %s1235 = scalar_lea.vmem %s481, %s874 [#allocation5]
        %v1236 = vld [vmem:[%s1235] sm:$0xff]
        %v1237 = vadd.f32 %v1236, %v1230
        %v1238 = vld [vmem:[%s5] sm:$0x1]
        %v1239 = vld [vmem:[%s6] sm:$0x1]
        %1240 = vadd.xlane.f32.xlu0 %v1237
        %v1241 = vpop.xlane.xlu0 %1240
        %v1242 = vrcp.pop 128.0
        %v1243 = vmul.f32 %v1241, %v1242
        %v1244 = vsub.f32 %v1237, %v1243
        %v1245 = vmul.f32 %v1244, %v1244
        %1246 = vadd.xlane.f32.xlu0 %v1245
        %v1247 = vpop.xlane.xlu0 %1246
        %v1248 = vmul.f32 %v1247, %v1242
        %v1249 = vadd.f32 %v1248, 1e-05
        %v1250 = vrsqrt.pop %v1249
        %v1251 = vmul.f32 %v1244, %v1250
        %v1253 = vlaneseq
        %v1254 = vshrl.u32 %v1253, 7
        %v1255 = vsub.s32 0, %v1254
        %v1256 = vrot.slane %v1238, %v1255
        %v1258 = vmul.f32 %v1251, %v1256
        %v1260 = vlaneseq
        %v1261 = vshrl.u32 %v1260, 7
        %v1262 = vsub.s32 0, %v1261
        %v1263 = vrot.slane %v1239, %v1262
        %v1265 = vadd.f32 %v1258, %v1263
        %v1266 = vpack.c.bf16 %v1265, %v1265
        %v1267 = vld [vmem:[#allocation13] sm:$0xff]
        %v1268 = vld [vmem:[#allocation13 + $0x8] sm:$0xff]
        %v1269 = vld [vmem:[#allocation13 + $0x10] sm:$0xff]
        %v1270 = vld [vmem:[#allocation13 + $0x18] sm:$0xff]
        %v1271 = vld [vmem:[#allocation13 + $0x20] sm:$0xff]
        %v1272 = vld [vmem:[#allocation13 + $0x28] sm:$0xff]
        %v1273 = vld [vmem:[#allocation13 + $0x30] sm:$0xff]
        %v1274 = vld [vmem:[#allocation13 + $0x38] sm:$0xff]
        %v1275 = vld [vmem:[#allocation13 + $0x40] sm:$0xff]
        %v1276 = vld [vmem:[#allocation13 + $0x48] sm:$0xff]
        %v1277 = vld [vmem:[#allocation13 + $0x50] sm:$0xff]
        %v1278 = vld [vmem:[#allocation13 + $0x58] sm:$0xff]
        %v1279 = vld [vmem:[#allocation13 + $0x60] sm:$0xff]
        %v1280 = vld [vmem:[#allocation13 + $0x68] sm:$0xff]
        %v1281 = vld [vmem:[#allocation13 + $0x70] sm:$0xff]
        %v1282 = vld [vmem:[#allocation13 + $0x78] sm:$0xff]
        %v1283 = vld [vmem:[#allocation13 + $0x80] sm:$0xff]
        %v1284 = vld [vmem:[#allocation13 + $0x88] sm:$0xff]
        %v1285 = vld [vmem:[#allocation13 + $0x90] sm:$0xff]
        %v1286 = vld [vmem:[#allocation13 + $0x98] sm:$0xff]
        %v1287 = vld [vmem:[#allocation13 + $0xa0] sm:$0xff]
        %v1288 = vld [vmem:[#allocation13 + $0xa8] sm:$0xff]
        %v1289 = vld [vmem:[#allocation13 + $0xb0] sm:$0xff]
        %v1290 = vld [vmem:[#allocation13 + $0xb8] sm:$0xff]
        %v1291 = vld [vmem:[#allocation13 + $0xc0] sm:$0xff]
        %v1292 = vld [vmem:[#allocation13 + $0xc8] sm:$0xff]
        %v1293 = vld [vmem:[#allocation13 + $0xd0] sm:$0xff]
        %v1294 = vld [vmem:[#allocation13 + $0xd8] sm:$0xff]
        %v1295 = vld [vmem:[#allocation13 + $0xe0] sm:$0xff]
        %v1296 = vld [vmem:[#allocation13 + $0xe8] sm:$0xff]
        %v1297 = vld [vmem:[#allocation13 + $0xf0] sm:$0xff]
        %v1298 = vld [vmem:[#allocation13 + $0xf8] sm:$0xff]
        %v1299 = vld [vmem:[%s8] sm:$0xf]
        %v1301 = vlaneseq
        %v1302 = vshrl.u32 %v1301, 7
        %v1303 = vsub.s32 0, %v1302
        %v1304 = vrot.slane %v1299, %v1303
        %v1305 = vlaneseq
        %v1306 = vshrl.u32 %v1305, 7
        %v1307 = vsub.s32 1, %v1306
        %v1308 = vrot.slane %v1299, %v1307
        %v1309 = vlaneseq
        %v1310 = vshrl.u32 %v1309, 7
        %v1311 = vsub.s32 2, %v1310
        %v1312 = vrot.slane %v1299, %v1311
        %v1313 = vlaneseq
        %v1314 = vshrl.u32 %v1313, 7
        %v1315 = vsub.s32 3, %v1314
        %v1316 = vrot.slane %v1299, %v1315
        %v1353 = vunpack.c.l.b16 %v1267
        %v1354 = vunpack.c.h.b16 %v1267
        %v1355 = vunpack.c.l.b16 %v1268
        %v1356 = vunpack.c.h.b16 %v1268
        %v1357 = vunpack.c.l.b16 %v1269
        %v1358 = vunpack.c.h.b16 %v1269
        %v1359 = vunpack.c.l.b16 %v1270
        %v1360 = vunpack.c.h.b16 %v1270
        %v1361 = vunpack.c.l.b16 %v1271
        %v1362 = vunpack.c.h.b16 %v1271
        %v1363 = vunpack.c.l.b16 %v1272
        %v1364 = vunpack.c.h.b16 %v1272
        %v1365 = vunpack.c.l.b16 %v1273
        %v1366 = vunpack.c.h.b16 %v1273
        %v1367 = vunpack.c.l.b16 %v1274
        %v1368 = vunpack.c.h.b16 %v1274
        %v1369 = vunpack.c.l.b16 %v1275
        %v1370 = vunpack.c.h.b16 %v1275
        %v1371 = vunpack.c.l.b16 %v1276
        %v1372 = vunpack.c.h.b16 %v1276
        %v1373 = vunpack.c.l.b16 %v1277
        %v1374 = vunpack.c.h.b16 %v1277
        %v1375 = vunpack.c.l.b16 %v1278
        %v1376 = vunpack.c.h.b16 %v1278
        %v1377 = vunpack.c.l.b16 %v1279
        %v1378 = vunpack.c.h.b16 %v1279
        %v1379 = vunpack.c.l.b16 %v1280
        %v1380 = vunpack.c.h.b16 %v1280
        %v1381 = vunpack.c.l.b16 %v1281
        %v1382 = vunpack.c.h.b16 %v1281
        %v1383 = vunpack.c.l.b16 %v1282
        %v1384 = vunpack.c.h.b16 %v1282
        %v1385 = vunpack.c.l.b16 %v1283
        %v1386 = vunpack.c.h.b16 %v1283
        %v1387 = vunpack.c.l.b16 %v1284
        %v1388 = vunpack.c.h.b16 %v1284
        %v1389 = vunpack.c.l.b16 %v1285
        %v1390 = vunpack.c.h.b16 %v1285
        %v1391 = vunpack.c.l.b16 %v1286
        %v1392 = vunpack.c.h.b16 %v1286
        %v1393 = vunpack.c.l.b16 %v1287
        %v1394 = vunpack.c.h.b16 %v1287
        %v1395 = vunpack.c.l.b16 %v1288
        %v1396 = vunpack.c.h.b16 %v1288
        %v1397 = vunpack.c.l.b16 %v1289
        %v1398 = vunpack.c.h.b16 %v1289
        %v1399 = vunpack.c.l.b16 %v1290
        %v1400 = vunpack.c.h.b16 %v1290
        %v1401 = vunpack.c.l.b16 %v1291
        %v1402 = vunpack.c.h.b16 %v1291
        %v1403 = vunpack.c.l.b16 %v1292
        %v1404 = vunpack.c.h.b16 %v1292
        %v1405 = vunpack.c.l.b16 %v1293
        %v1406 = vunpack.c.h.b16 %v1293
        %v1407 = vunpack.c.l.b16 %v1294
        %v1408 = vunpack.c.h.b16 %v1294
        %v1409 = vunpack.c.l.b16 %v1295
        %v1410 = vunpack.c.h.b16 %v1295
        %v1411 = vunpack.c.l.b16 %v1296
        %v1412 = vunpack.c.h.b16 %v1296
        %v1413 = vunpack.c.l.b16 %v1297
        %v1414 = vunpack.c.h.b16 %v1297
        %v1415 = vunpack.c.l.b16 %v1298
        %v1416 = vunpack.c.h.b16 %v1298
        %v1417 = vpack.c.b16 %v1357, %v1353
        %v1418 = vpack.c.b16 %v1358, %v1354
        %v1419 = vpack.c.b16 %v1359, %v1355
        %v1420 = vpack.c.b16 %v1360, %v1356
        %v1421 = vpack.c.b16 %v1365, %v1361
        %v1422 = vpack.c.b16 %v1366, %v1362
        %v1423 = vpack.c.b16 %v1367, %v1363
        %v1424 = vpack.c.b16 %v1368, %v1364
        %v1425 = vpack.c.b16 %v1373, %v1369
        %v1426 = vpack.c.b16 %v1374, %v1370
        %v1427 = vpack.c.b16 %v1375, %v1371
        %v1428 = vpack.c.b16 %v1376, %v1372
        %v1429 = vpack.c.b16 %v1381, %v1377
        %v1430 = vpack.c.b16 %v1382, %v1378
        %v1431 = vpack.c.b16 %v1383, %v1379
        %v1432 = vpack.c.b16 %v1384, %v1380
        %v1433 = vpack.c.b16 %v1389, %v1385
        %v1434 = vpack.c.b16 %v1390, %v1386
        %v1435 = vpack.c.b16 %v1391, %v1387
        %v1436 = vpack.c.b16 %v1392, %v1388
        %v1437 = vpack.c.b16 %v1397, %v1393
        %v1438 = vpack.c.b16 %v1398, %v1394
        %v1439 = vpack.c.b16 %v1399, %v1395
        %v1440 = vpack.c.b16 %v1400, %v1396
        %v1441 = vpack.c.b16 %v1405, %v1401
        %v1442 = vpack.c.b16 %v1406, %v1402
        %v1443 = vpack.c.b16 %v1407, %v1403
        %v1444 = vpack.c.b16 %v1408, %v1404
        %v1445 = vpack.c.b16 %v1413, %v1409
        %v1446 = vpack.c.b16 %v1414, %v1410
        %v1447 = vpack.c.b16 %v1415, %v1411
        %v1448 = vpack.c.b16 %v1416, %v1412
        %1481 = vmatprep.subr.bf16.mxu0 %v1446
        %1482 = vmatpush1.bf16.msra.mxu0 %v1445
        %1483 = vmatprep.subr.bf16.mxu0 %v1442
        %1484 = vmatpush1.bf16.msra.mxu0 %v1441
        %1485 = vmatprep.subr.bf16.mxu0 %v1438
        %1486 = vmatpush1.bf16.msra.mxu0 %v1437
        %1487 = vmatprep.subr.bf16.mxu0 %v1434
        %1488 = vmatpush1.bf16.msra.mxu0 %v1433
        %1489 = vmatprep.subr.bf16.mxu0 %v1430
        %1490 = vmatpush1.bf16.msra.mxu0 %v1429
        %1491 = vmatprep.subr.bf16.mxu0 %v1426
        %1492 = vmatpush1.bf16.msra.mxu0 %v1425
        %1493 = vmatprep.subr.bf16.mxu0 %v1422
        %1494 = vmatpush1.bf16.msra.mxu0 %v1421
        %1495 = vmatprep.subr.bf16.mxu0 %v1418
        %1496 = vmatpush1.bf16.msra.mxu0 %v1417
        %1497 = vmatprep.subr.bf16.mxu0 0
        %1498 = vmatpush2.bf16.msra.mxu0 0
        %1499 = vmatprep.subr.bf16.mxu0 0
        %1500 = vmatpush2.bf16.msra.mxu0 0
        %1501 = vmatprep.subr.bf16.mxu0 0
        %1502 = vmatpush2.bf16.msra.mxu0 0
        %1503 = vmatprep.subr.bf16.mxu0 0
        %1504 = vmatpush2.bf16.msra.mxu0 0
        %1505 = vmatprep.subr.bf16.mxu0 0
        %1506 = vmatpush2.bf16.msra.mxu0 0
        %1507 = vmatprep.subr.bf16.mxu0 0
        %1508 = vmatpush2.bf16.msra.mxu0 0
        %1509 = vmatprep.subr.bf16.mxu0 0
        %1510 = vmatpush2.bf16.msra.mxu0 0
        %1511 = vmatprep.subr.bf16.mxu0 0
        %1512 = vmatpush2.bf16.msra.mxu0 0
        %1513 = vmatprep.mubr.bf16.mxu0 0
        %1514 = vmatmul.mubr.bf16.gmra.mxu0 %v1266
        %v1515 = vpop.f32.mrf.mxu0
        %v1516 = vadd.f32 %v1304, %v1515
        %v1517 = vpop.f32.mrf.mxu0
        %v1518 = vadd.f32 %v1308, %v1517
        %v1519 = vpop.f32.mrf.mxu0
        %v1520 = vpop.f32.mrf.mxu0
        %1521 = vdwg.mxu0
        %1522 = vmatprep.subr.bf16.mxu0 %v1448
        %1523 = vmatpush1.bf16.msra.mxu0 %v1447
        %1524 = vmatprep.subr.bf16.mxu0 %v1444
        %1525 = vmatpush1.bf16.msra.mxu0 %v1443
        %1526 = vmatprep.subr.bf16.mxu0 %v1440
        %1527 = vmatpush1.bf16.msra.mxu0 %v1439
        %1528 = vmatprep.subr.bf16.mxu0 %v1436
        %1529 = vmatpush1.bf16.msra.mxu0 %v1435
        %1530 = vmatprep.subr.bf16.mxu0 %v1432
        %1531 = vmatpush1.bf16.msra.mxu0 %v1431
        %1532 = vmatprep.subr.bf16.mxu0 %v1428
        %1533 = vmatpush1.bf16.msra.mxu0 %v1427
        %1534 = vmatprep.subr.bf16.mxu0 %v1424
        %1535 = vmatpush1.bf16.msra.mxu0 %v1423
        %1536 = vmatprep.subr.bf16.mxu0 %v1420
        %1537 = vmatpush1.bf16.msra.mxu0 %v1419
        %1538 = vmatprep.subr.bf16.mxu0 0
        %1539 = vmatpush2.bf16.msra.mxu0 0
        %1540 = vmatprep.subr.bf16.mxu0 0
        %1541 = vmatpush2.bf16.msra.mxu0 0
        %1542 = vmatprep.subr.bf16.mxu0 0
        %1543 = vmatpush2.bf16.msra.mxu0 0
        %1544 = vmatprep.subr.bf16.mxu0 0
        %1545 = vmatpush2.bf16.msra.mxu0 0
        %1546 = vmatprep.subr.bf16.mxu0 0
        %1547 = vmatpush2.bf16.msra.mxu0 0
        %1548 = vmatprep.subr.bf16.mxu0 0
        %1549 = vmatpush2.bf16.msra.mxu0 0
        %1550 = vmatprep.subr.bf16.mxu0 0
        %1551 = vmatpush2.bf16.msra.mxu0 0
        %1552 = vmatprep.subr.bf16.mxu0 0
        %1553 = vmatpush2.bf16.msra.mxu0 0
        %1554 = vmatprep.mubr.bf16.mxu0 0
        %1555 = vmatmul.mubr.bf16.gmra.mxu0 %v1266
        %v1556 = vpop.f32.mrf.mxu0
        %v1557 = vadd.f32 %v1312, %v1556
        %v1558 = vpop.f32.mrf.mxu0
        %v1559 = vadd.f32 %v1316, %v1558
        %v1560 = vpop.f32.mrf.mxu0
        %v1561 = vpop.f32.mrf.mxu0
        %1562 = vdwg.mxu0
        %v1563 = vmul.f32 %v1516, %v1516
        %v1564 = vmul.f32 %v1518, %v1518
        %v1565 = vmul.f32 %v1557, %v1557
        %v1566 = vmul.f32 %v1559, %v1559
        %v1567 = vmul.f32 %v1516, %v1563
        %v1568 = vmul.f32 %v1518, %v1564
        %v1569 = vmul.f32 %v1557, %v1565
        %v1570 = vmul.f32 %v1559, %v1566
        %v1571 = vmul.f32 %v1567, 0.044715
        %v1572 = vmul.f32 %v1568, 0.044715
        %v1573 = vmul.f32 %v1569, 0.044715
        %v1574 = vmul.f32 %v1570, 0.044715
        %v1575 = vadd.f32 %v1516, %v1571
        %v1576 = vadd.f32 %v1518, %v1572
        %v1577 = vadd.f32 %v1557, %v1573
        %v1578 = vadd.f32 %v1559, %v1574
        %v1579 = vmul.f32 %v1575, 0.7978846
        %v1580 = vmul.f32 %v1576, 0.7978846
        %v1581 = vmul.f32 %v1577, 0.7978846
        %v1582 = vmul.f32 %v1578, 0.7978846
        %v1583 = vtanh.pop %v1579
        %v1584 = vtanh.pop %v1580
        %v1585 = vtanh.pop %v1581
        %v1586 = vtanh.pop %v1582
        %v1587 = vadd.f32 %v1583, 1.0
        %v1588 = vadd.f32 %v1584, 1.0
        %v1589 = vadd.f32 %v1585, 1.0
        %v1590 = vadd.f32 %v1586, 1.0
        %v1591 = vmul.f32 %v1587, 0.5
        %v1592 = vmul.f32 %v1588, 0.5
        %v1593 = vmul.f32 %v1589, 0.5
        %v1594 = vmul.f32 %v1590, 0.5
        %v1595 = vmul.f32 %v1516, %v1591
        %v1596 = vmul.f32 %v1518, %v1592
        %v1597 = vmul.f32 %v1557, %v1593
        %v1598 = vmul.f32 %v1559, %v1594
        %v1599 = vpack.c.bf16 %v1595, %v1595
        %v1600 = vpack.c.bf16 %v1596, %v1596
        %v1601 = vpack.c.bf16 %v1597, %v1597
        %v1602 = vpack.c.bf16 %v1598, %v1598
        %v1603 = vld [vmem:[#allocation14] sm:$0xf]
        %v1604 = vld [vmem:[#allocation14 + $0x4] sm:$0xf]
        %v1605 = vld [vmem:[#allocation14 + $0x8] sm:$0xf]
        %v1606 = vld [vmem:[#allocation14 + $0xc] sm:$0xf]
        %v1607 = vld [vmem:[#allocation14 + $0x10] sm:$0xf]
        %v1608 = vld [vmem:[#allocation14 + $0x14] sm:$0xf]
        %v1609 = vld [vmem:[#allocation14 + $0x18] sm:$0xf]
        %v1610 = vld [vmem:[#allocation14 + $0x1c] sm:$0xf]
        %v1611 = vld [vmem:[#allocation14 + $0x20] sm:$0xf]
        %v1612 = vld [vmem:[#allocation14 + $0x24] sm:$0xf]
        %v1613 = vld [vmem:[#allocation14 + $0x28] sm:$0xf]
        %v1614 = vld [vmem:[#allocation14 + $0x2c] sm:$0xf]
        %v1615 = vld [vmem:[#allocation14 + $0x30] sm:$0xf]
        %v1616 = vld [vmem:[#allocation14 + $0x34] sm:$0xf]
        %v1617 = vld [vmem:[#allocation14 + $0x38] sm:$0xf]
        %v1618 = vld [vmem:[#allocation14 + $0x3c] sm:$0xf]
        %v1619 = vld [vmem:[#allocation14 + $0x40] sm:$0xf]
        %v1620 = vld [vmem:[#allocation14 + $0x44] sm:$0xf]
        %v1621 = vld [vmem:[#allocation14 + $0x48] sm:$0xf]
        %v1622 = vld [vmem:[#allocation14 + $0x4c] sm:$0xf]
        %v1623 = vld [vmem:[#allocation14 + $0x50] sm:$0xf]
        %v1624 = vld [vmem:[#allocation14 + $0x54] sm:$0xf]
        %v1625 = vld [vmem:[#allocation14 + $0x58] sm:$0xf]
        %v1626 = vld [vmem:[#allocation14 + $0x5c] sm:$0xf]
        %v1627 = vld [vmem:[#allocation14 + $0x60] sm:$0xf]
        %v1628 = vld [vmem:[#allocation14 + $0x64] sm:$0xf]
        %v1629 = vld [vmem:[#allocation14 + $0x68] sm:$0xf]
        %v1630 = vld [vmem:[#allocation14 + $0x6c] sm:$0xf]
        %v1631 = vld [vmem:[#allocation14 + $0x70] sm:$0xf]
        %v1632 = vld [vmem:[#allocation14 + $0x74] sm:$0xf]
        %v1633 = vld [vmem:[#allocation14 + $0x78] sm:$0xf]
        %v1634 = vld [vmem:[#allocation14 + $0x7c] sm:$0xf]
        %v1635 = vld [vmem:[#allocation14 + $0x80] sm:$0xf]
        %v1636 = vld [vmem:[#allocation14 + $0x84] sm:$0xf]
        %v1637 = vld [vmem:[#allocation14 + $0x88] sm:$0xf]
        %v1638 = vld [vmem:[#allocation14 + $0x8c] sm:$0xf]
        %v1639 = vld [vmem:[#allocation14 + $0x90] sm:$0xf]
        %v1640 = vld [vmem:[#allocation14 + $0x94] sm:$0xf]
        %v1641 = vld [vmem:[#allocation14 + $0x98] sm:$0xf]
        %v1642 = vld [vmem:[#allocation14 + $0x9c] sm:$0xf]
        %v1643 = vld [vmem:[#allocation14 + $0xa0] sm:$0xf]
        %v1644 = vld [vmem:[#allocation14 + $0xa4] sm:$0xf]
        %v1645 = vld [vmem:[#allocation14 + $0xa8] sm:$0xf]
        %v1646 = vld [vmem:[#allocation14 + $0xac] sm:$0xf]
        %v1647 = vld [vmem:[#allocation14 + $0xb0] sm:$0xf]
        %v1648 = vld [vmem:[#allocation14 + $0xb4] sm:$0xf]
        %v1649 = vld [vmem:[#allocation14 + $0xb8] sm:$0xf]
        %v1650 = vld [vmem:[#allocation14 + $0xbc] sm:$0xf]
        %v1651 = vld [vmem:[#allocation14 + $0xc0] sm:$0xf]
        %v1652 = vld [vmem:[#allocation14 + $0xc4] sm:$0xf]
        %v1653 = vld [vmem:[#allocation14 + $0xc8] sm:$0xf]
        %v1654 = vld [vmem:[#allocation14 + $0xcc] sm:$0xf]
        %v1655 = vld [vmem:[#allocation14 + $0xd0] sm:$0xf]
        %v1656 = vld [vmem:[#allocation14 + $0xd4] sm:$0xf]
        %v1657 = vld [vmem:[#allocation14 + $0xd8] sm:$0xf]
        %v1658 = vld [vmem:[#allocation14 + $0xdc] sm:$0xf]
        %v1659 = vld [vmem:[#allocation14 + $0xe0] sm:$0xf]
        %v1660 = vld [vmem:[#allocation14 + $0xe4] sm:$0xf]
        %v1661 = vld [vmem:[#allocation14 + $0xe8] sm:$0xf]
        %v1662 = vld [vmem:[#allocation14 + $0xec] sm:$0xf]
        %v1663 = vld [vmem:[#allocation14 + $0xf0] sm:$0xf]
        %v1664 = vld [vmem:[#allocation14 + $0xf4] sm:$0xf]
        %v1665 = vld [vmem:[#allocation14 + $0xf8] sm:$0xf]
        %v1666 = vld [vmem:[#allocation14 + $0xfc] sm:$0xf]
        %v1667 = vld [vmem:[%s10] sm:$0x1]
        %v1669 = vlaneseq
        %v1670 = vshrl.u32 %v1669, 7
        %v1671 = vsub.s32 0, %v1670
        %v1672 = vrot.slane %v1667, %v1671
        %v1738 = vunpack.c.l.b16 %v1603
        %v1739 = vunpack.c.l.b16 %v1604
        %v1740 = vunpack.c.l.b16 %v1605
        %v1741 = vunpack.c.l.b16 %v1606
        %v1742 = vunpack.c.l.b16 %v1607
        %v1743 = vunpack.c.l.b16 %v1608
        %v1744 = vunpack.c.l.b16 %v1609
        %v1745 = vunpack.c.l.b16 %v1610
        %v1746 = vunpack.c.l.b16 %v1611
        %v1747 = vunpack.c.l.b16 %v1612
        %v1748 = vunpack.c.l.b16 %v1613
        %v1749 = vunpack.c.l.b16 %v1614
        %v1750 = vunpack.c.l.b16 %v1615
        %v1751 = vunpack.c.l.b16 %v1616
        %v1752 = vunpack.c.l.b16 %v1617
        %v1753 = vunpack.c.l.b16 %v1618
        %v1754 = vunpack.c.l.b16 %v1619
        %v1755 = vunpack.c.l.b16 %v1620
        %v1756 = vunpack.c.l.b16 %v1621
        %v1757 = vunpack.c.l.b16 %v1622
        %v1758 = vunpack.c.l.b16 %v1623
        %v1759 = vunpack.c.l.b16 %v1624
        %v1760 = vunpack.c.l.b16 %v1625
        %v1761 = vunpack.c.l.b16 %v1626
        %v1762 = vunpack.c.l.b16 %v1627
        %v1763 = vunpack.c.l.b16 %v1628
        %v1764 = vunpack.c.l.b16 %v1629
        %v1765 = vunpack.c.l.b16 %v1630
        %v1766 = vunpack.c.l.b16 %v1631
        %v1767 = vunpack.c.l.b16 %v1632
        %v1768 = vunpack.c.l.b16 %v1633
        %v1769 = vunpack.c.l.b16 %v1634
        %v1770 = vunpack.c.l.b16 %v1635
        %v1771 = vunpack.c.l.b16 %v1636
        %v1772 = vunpack.c.l.b16 %v1637
        %v1773 = vunpack.c.l.b16 %v1638
        %v1774 = vunpack.c.l.b16 %v1639
        %v1775 = vunpack.c.l.b16 %v1640
        %v1776 = vunpack.c.l.b16 %v1641
        %v1777 = vunpack.c.l.b16 %v1642
        %v1778 = vunpack.c.l.b16 %v1643
        %v1779 = vunpack.c.l.b16 %v1644
        %v1780 = vunpack.c.l.b16 %v1645
        %v1781 = vunpack.c.l.b16 %v1646
        %v1782 = vunpack.c.l.b16 %v1647
        %v1783 = vunpack.c.l.b16 %v1648
        %v1784 = vunpack.c.l.b16 %v1649
        %v1785 = vunpack.c.l.b16 %v1650
        %v1786 = vunpack.c.l.b16 %v1651
        %v1787 = vunpack.c.l.b16 %v1652
        %v1788 = vunpack.c.l.b16 %v1653
        %v1789 = vunpack.c.l.b16 %v1654
        %v1790 = vunpack.c.l.b16 %v1655
        %v1791 = vunpack.c.l.b16 %v1656
        %v1792 = vunpack.c.l.b16 %v1657
        %v1793 = vunpack.c.l.b16 %v1658
        %v1794 = vunpack.c.l.b16 %v1659
        %v1795 = vunpack.c.l.b16 %v1660
        %v1796 = vunpack.c.l.b16 %v1661
        %v1797 = vunpack.c.l.b16 %v1662
        %v1798 = vunpack.c.l.b16 %v1663
        %v1799 = vunpack.c.l.b16 %v1664
        %v1800 = vunpack.c.l.b16 %v1665
        %v1801 = vunpack.c.l.b16 %v1666
        %v1802 = vpack.c.b16 %v1739, %v1738
        %v1803 = vpack.c.b16 %v1741, %v1740
        %v1804 = vpack.c.b16 %v1743, %v1742
        %v1805 = vpack.c.b16 %v1745, %v1744
        %v1806 = vpack.c.b16 %v1747, %v1746
        %v1807 = vpack.c.b16 %v1749, %v1748
        %v1808 = vpack.c.b16 %v1751, %v1750
        %v1809 = vpack.c.b16 %v1753, %v1752
        %v1810 = vpack.c.b16 %v1755, %v1754
        %v1811 = vpack.c.b16 %v1757, %v1756
        %v1812 = vpack.c.b16 %v1759, %v1758
        %v1813 = vpack.c.b16 %v1761, %v1760
        %v1814 = vpack.c.b16 %v1763, %v1762
        %v1815 = vpack.c.b16 %v1765, %v1764
        %v1816 = vpack.c.b16 %v1767, %v1766
        %v1817 = vpack.c.b16 %v1769, %v1768
        %v1818 = vpack.c.b16 %v1771, %v1770
        %v1819 = vpack.c.b16 %v1773, %v1772
        %v1820 = vpack.c.b16 %v1775, %v1774
        %v1821 = vpack.c.b16 %v1777, %v1776
        %v1822 = vpack.c.b16 %v1779, %v1778
        %v1823 = vpack.c.b16 %v1781, %v1780
        %v1824 = vpack.c.b16 %v1783, %v1782
        %v1825 = vpack.c.b16 %v1785, %v1784
        %v1826 = vpack.c.b16 %v1787, %v1786
        %v1827 = vpack.c.b16 %v1789, %v1788
        %v1828 = vpack.c.b16 %v1791, %v1790
        %v1829 = vpack.c.b16 %v1793, %v1792
        %v1830 = vpack.c.b16 %v1795, %v1794
        %v1831 = vpack.c.b16 %v1797, %v1796
        %v1832 = vpack.c.b16 %v1799, %v1798
        %v1833 = vpack.c.b16 %v1801, %v1800
        %1866 = vmatprep.subr.bf16.mxu0 0
        %1867 = vmatpush1.bf16.msra.mxu0 %v1809
        %1868 = vmatprep.subr.bf16.mxu0 0
        %1869 = vmatpush1.bf16.msra.mxu0 %v1808
        %1870 = vmatprep.subr.bf16.mxu0 0
        %1871 = vmatpush1.bf16.msra.mxu0 %v1807
        %1872 = vmatprep.subr.bf16.mxu0 0
        %1873 = vmatpush1.bf16.msra.mxu0 %v1806
        %1874 = vmatprep.subr.bf16.mxu0 0
        %1875 = vmatpush1.bf16.msra.mxu0 %v1805
        %1876 = vmatprep.subr.bf16.mxu0 0
        %1877 = vmatpush1.bf16.msra.mxu0 %v1804
        %1878 = vmatprep.subr.bf16.mxu0 0
        %1879 = vmatpush1.bf16.msra.mxu0 %v1803
        %1880 = vmatprep.subr.bf16.mxu0 0
        %1881 = vmatpush1.bf16.msra.mxu0 %v1802
        %1882 = vmatprep.subr.bf16.mxu0 0
        %1883 = vmatpush2.bf16.msra.mxu0 %v1817
        %1884 = vmatprep.subr.bf16.mxu0 0
        %1885 = vmatpush2.bf16.msra.mxu0 %v1816
        %1886 = vmatprep.subr.bf16.mxu0 0
        %1887 = vmatpush2.bf16.msra.mxu0 %v1815
        %1888 = vmatprep.subr.bf16.mxu0 0
        %1889 = vmatpush2.bf16.msra.mxu0 %v1814
        %1890 = vmatprep.subr.bf16.mxu0 0
        %1891 = vmatpush2.bf16.msra.mxu0 %v1813
        %1892 = vmatprep.subr.bf16.mxu0 0
        %1893 = vmatpush2.bf16.msra.mxu0 %v1812
        %1894 = vmatprep.subr.bf16.mxu0 0
        %1895 = vmatpush2.bf16.msra.mxu0 %v1811
        %1896 = vmatprep.subr.bf16.mxu0 0
        %1897 = vmatpush2.bf16.msra.mxu0 %v1810
        %1898 = vmatprep.mubr.bf16.mxu0 %v1600
        %1899 = vmatmul.mubr.bf16.gmra.mxu0 %v1599
        %v1900 = vpop.f32.mrf.mxu0
        %v1901 = vadd.f32 %v1672, %v1900
        %v1902 = vpop.f32.mrf.mxu0
        %v1903 = vpop.f32.mrf.mxu0
        %v1904 = vpop.f32.mrf.mxu0
        %1905 = vdwg.mxu0
        %1906 = vmatprep.subr.bf16.mxu0 0
        %1907 = vmatpush1.bf16.msra.mxu0 %v1825
        %1908 = vmatprep.subr.bf16.mxu0 0
        %1909 = vmatpush1.bf16.msra.mxu0 %v1824
        %1910 = vmatprep.subr.bf16.mxu0 0
        %1911 = vmatpush1.bf16.msra.mxu0 %v1823
        %1912 = vmatprep.subr.bf16.mxu0 0
        %1913 = vmatpush1.bf16.msra.mxu0 %v1822
        %1914 = vmatprep.subr.bf16.mxu0 0
        %1915 = vmatpush1.bf16.msra.mxu0 %v1821
        %1916 = vmatprep.subr.bf16.mxu0 0
        %1917 = vmatpush1.bf16.msra.mxu0 %v1820
        %1918 = vmatprep.subr.bf16.mxu0 0
        %1919 = vmatpush1.bf16.msra.mxu0 %v1819
        %1920 = vmatprep.subr.bf16.mxu0 0
        %1921 = vmatpush1.bf16.msra.mxu0 %v1818
        %1922 = vmatprep.subr.bf16.mxu0 0
        %1923 = vmatpush2.bf16.msra.mxu0 %v1833
        %1924 = vmatprep.subr.bf16.mxu0 0
        %1925 = vmatpush2.bf16.msra.mxu0 %v1832
        %1926 = vmatprep.subr.bf16.mxu0 0
        %1927 = vmatpush2.bf16.msra.mxu0 %v1831
        %1928 = vmatprep.subr.bf16.mxu0 0
        %1929 = vmatpush2.bf16.msra.mxu0 %v1830
        %1930 = vmatprep.subr.bf16.mxu0 0
        %1931 = vmatpush2.bf16.msra.mxu0 %v1829
        %1932 = vmatprep.subr.bf16.mxu0 0
        %1933 = vmatpush2.bf16.msra.mxu0 %v1828
        %1934 = vmatprep.subr.bf16.mxu0 0
        %1935 = vmatpush2.bf16.msra.mxu0 %v1827
        %1936 = vmatprep.subr.bf16.mxu0 0
        %1937 = vmatpush2.bf16.msra.mxu0 %v1826
        %1938 = vmatprep.mubr.bf16.mxu0 %v1602
        %1939 = vmatmul.mubr.bf16.gmra.mxu0 %v1601
        %v1940 = vpop.f32.mrf.mxu0
        %v1941 = vadd.f32 %v1901, %v1940
        %v1942 = vpop.f32.mrf.mxu0
        %v1943 = vpop.f32.mrf.mxu0
        %v1944 = vpop.f32.mrf.mxu0
        %1945 = vdwg.mxu0
        %v1946 = vadd.f32 %v1265, %v1941
        %v1947 = vld [vmem:[%s11] sm:$0x1]
        %v1948 = vld [vmem:[%s12] sm:$0x1]
        %1949 = vadd.xlane.f32.xlu0 %v1946
        %v1950 = vpop.xlane.xlu0 %1949
        %v1951 = vmul.f32 %v1950, %v1242
        %v1952 = vsub.f32 %v1946, %v1951
        %v1953 = vmul.f32 %v1952, %v1952
        %1954 = vadd.xlane.f32.xlu0 %v1953
        %v1955 = vpop.xlane.xlu0 %1954
        %v1956 = vmul.f32 %v1955, %v1242
        %v1957 = vadd.f32 %v1956, 1e-05
        %v1958 = vrsqrt.pop %v1957
        %v1959 = vmul.f32 %v1952, %v1958
        %v1961 = vlaneseq
        %v1962 = vshrl.u32 %v1961, 7
        %v1963 = vsub.s32 0, %v1962
        %v1964 = vrot.slane %v1947, %v1963
        %v1966 = vmul.f32 %v1959, %v1964
        %v1968 = vlaneseq
        %v1969 = vshrl.u32 %v1968, 7
        %v1970 = vsub.s32 0, %v1969
        %v1971 = vrot.slane %v1948, %v1970
        %v1973 = vadd.f32 %v1966, %v1971
        %1974 = vst [vmem:[%s543] sm:$0xff] %v1973
        %s1975 = sand.u32 %s333, 1
        %s1976 = scalar_lea.sflag [#allocation7], %s1975
        %s1977 = sand.u32 %s333, 1
        %s1978 = smul.addr %s1977, 8
        %s1979 = scalar_lea.vmem [#allocation16], %s1978
        // Predicated region
        $region101: #{tpu_custom_call.1} parent=71 // pred_check
          %p1980 = pneg %p343
        $region102: #{tpu_custom_call.1} parent=71 // pred_check_branch
          %1982 = sbr.rel (%p1980) target = $region104
        $region103: #{tpu_custom_call.1} parent=71 // pred_region
          %s1984 = ssub.s32 128, 128
          %1985 = vsyncadd %s1976, %s1984
          %s1986 = smul.addr %s37, 2
          %s1987 = sadd.s32 %s38, %s1986
          %s1988 = smul.addr %s1987, 128
          %s1989 = scalar_lea.hbm %s13, %s1988
          %s1991 = sshll.u32 %s1979, 4
          %s1992 = int_to_ptr.vmem [resolvable:$true] %s1991
          %1994 = dma.vmem_to_hbm [thread:$0]  %s1992, 128, %s1989, %s1976
        $region104: #{tpu_custom_call.1} parent=71 // pred_fallthru
          _
      $region72: #{tpu_custom_call.1} parent=5 // pred_fallthru
        _
      %p1995 = scmp.le.s32.totalorder 2, %s28
      // Predicated region
      $region105: #{tpu_custom_call.1} parent=5 // pred_check
        %p1996 = pneg %p1995
      $region106: #{tpu_custom_call.1} parent=5 // pred_check_branch
        %1998 = sbr.rel (%p1996) target = $region108
      $region107: #{tpu_custom_call.1} parent=5 // pred_region
        %s1999 = ssub.s32 %s28, 2
        // Predicated region
        $region109: #{tpu_custom_call.1} parent=107 // pred_check
          %p2000 = pneg %p349
        $region110: #{tpu_custom_call.1} parent=107 // pred_check_branch
          %2002 = sbr.rel (%p2000) target = $region112
        $region111: #{tpu_custom_call.1} parent=107 // pred_region
          %s2003 = sand.u32 %s334, 1
          %s2004 = scalar_lea.sflag [#allocation7], %s2003
          %s2005 = sand.u32 %s334, 1
          %s2006 = smul.addr %s2005, 8
          %s2007 = scalar_lea.vmem [#allocation16], %s2006
          %2008 = dma.done %s2004, 128
        $region112: #{tpu_custom_call.1} parent=107 // pred_fallthru
          _
      $region108: #{tpu_custom_call.1} parent=5 // pred_fallthru
        _
    $region6: #{tpu_custom_call.1} parent=1 // loop_footer
      %s32 = sadd.s32 1, %s28
    $region7: #{tpu_custom_call.1} parent=1 // loop_footer_branch
      %27 = sbr.rel target = $region3
    $region8: #{tpu_custom_call.1} parent=1 // loop_exit
      _
    %2009 = vsyncpa [#allocation6], 1
    %s2010 = scalar_lea.sflag [#allocation6], 1
    %2011 = vsyncpa %s2010, 1
    %2012 = vsyncpa [#allocation9], 1
    %2013 = vsyncpa [#allocation12], 1
    %2014 = vsyncpa [#allocation15], 1
    %2015 = vsyncpa [#allocation7], 1
    %s2016 = scalar_lea.sflag [#allocation7], 1
    %2017 = vsyncpa %s2016, 1

</llo_original>
